<compile_context>
chip_gen: v5e
topology: v5e:2x2
jax: 0.10.0
libtpu: 0.0.40
codegen_flags: <defaults>
</compile_context>

<pallas_src>
import functools

import jax
import jax.numpy as jnp
from jax.experimental import pallas as pl
from jax.experimental.pallas import tpu as pltpu

NEG_SLOPE_ATT = 0.2      # GATConv attention leaky_relu slope
NEG_SLOPE_OUT = 0.01     # F.leaky_relu default applied after each encoder layer
BN_EPS = 1e-5
BN_SCALE = 1.0 / (1.0 + BN_EPS) ** 0.5   # eval BN with fresh running stats
LANE = 128
MASK_NEG = -1e30                          # sentinel for masked attention logits


def _round_up(x, m):
    return (x + m - 1) // m * m


def _leaky_relu(x, slope):
    return jnp.where(x > 0, x, slope * x)


def _tpu_budget():
    """(max_tile, vmem_limit_bytes) for the current TPU generation."""
    vmem_bytes = None
    try:
        info_fn = getattr(pltpu, "get_tpu_info", None)
        if info_fn is not None:
            vmem_bytes = getattr(info_fn(), "vmem_capacity_bytes", None)
    except Exception:
        vmem_bytes = None
    if vmem_bytes is None:
        vmem_bytes = 64 * 1024 * 1024          # conservative: assume the smallest (v7x) part
    if vmem_bytes >= 100 * 1024 * 1024:        # v5e / v6e: 128 MiB physical VMEM
        return 512, 96 * 1024 * 1024
    return 256, 48 * 1024 * 1024               # v7x: 64 MiB physical VMEM


def _pick_tiling(n, max_tile):
    """Destination-row padding and tile.  tile is either the full padded node count
    (single grid step -> fused layer kernel) or a multiple of 128, which keeps the
    transposed alpha_src blocks lane-dense."""
    n8 = _round_up(max(n, 8), 8)
    if n8 <= 128:
        return n8, n8
    n128 = _round_up(n8, 128)
    if n128 <= max_tile:
        # Small/medium graph: split into two 128-multiples when possible so both
        # v7x TensorCores get a destination tile.
        tile = n128 // 2 if n128 % 256 == 0 else n128
    else:
        tile = max_tile
    return _round_up(n128, tile), tile


def _pad2(a, rows, cols, dtype):
    return jnp.zeros((rows, cols), dtype).at[:a.shape[0], :a.shape[1]].set(a.astype(dtype))


# ---------------------------------------------------------------------------
# Shared per-tile compute (traced inside the kernels below).
# ---------------------------------------------------------------------------
def _project_compute(heads, x, w, a_mat, sel):
    """x [T, Fin] bf16, w [Fin, HCp] bf16, a_mat [HCp, 2H] bf16, sel [H, HCp] f32.
    Returns (xp_stack: H x [T, HCp] bf16 head-masked, alpha_src^T [H, T] f32,
    alpha_dst [T, H] f32)."""
    xp = jnp.dot(x, w, preferred_element_type=jnp.float32)                 # [T, HCp]
    alpha = jnp.dot(xp.astype(jnp.bfloat16), a_mat,
                    preferred_element_type=jnp.float32)                    # [T, 2H]
    asrc_t = alpha[:, :heads].T                                            # [H, T]
    adst = alpha[:, heads:]                                                # [T, H]
    xp_stack = [(xp * sel[h:h + 1, :]).astype(jnp.bfloat16) for h in range(heads)]
    return xp_stack, asrc_t, adst


def _attend_compute(heads, mask, xp_stack, asrc_t, adst, bias):
    """Masked multi-head softmax aggregation for one destination-row tile.
    mask [T, S] bool, xp_stack: H x [S, HCp] bf16 (head-masked columns),
    asrc_t [H, S] f32, adst [T, H] f32, bias [1, HCp] f32 -> [T, HCp] f32."""
    acc = None
    for h in range(heads):
        e = _leaky_relu(adst[:, h:h + 1] + asrc_t[h:h + 1, :], NEG_SLOPE_ATT)
        e = jnp.where(mask, e, jnp.float32(MASK_NEG))        # masked row-max (no underflow)
        m = jnp.max(e, axis=1, keepdims=True)
        p = jnp.exp(e - m)                                   # masked entries -> exactly 0
        att = p * pl.reciprocal(jnp.sum(p, axis=1, keepdims=True))   # exact reciprocal
        contrib = jnp.dot(att.astype(jnp.bfloat16), xp_stack[h],
                          preferred_element_type=jnp.float32)        # lane-dense [T, HCp]
        acc = contrib if acc is None else acc + contrib
    return _leaky_relu(acc + bias, NEG_SLOPE_OUT)


# ---------------------------------------------------------------------------
# GAT layer kernels.
# ---------------------------------------------------------------------------
def _gat_project_kernel(heads, x_ref, w_ref, a_ref, sel_ref,
                        xps_ref, asrc_ref, adst_ref):
    xp_stack, asrc_t, adst = _project_compute(
        heads, x_ref[...], w_ref[...], a_ref[...], sel_ref[...])
    asrc_ref[...] = asrc_t
    adst_ref[...] = adst
    for h in range(heads):
        xps_ref[h] = xp_stack[h]


def _gat_attend_kernel(heads, adj_ref, xps_ref, asrc_ref, adst_ref, b_ref, out_ref):
    mask = adj_ref[...].astype(jnp.float32) > 0.0
    xp_stack = [xps_ref[h] for h in range(heads)]
    out = _attend_compute(heads, mask, xp_stack, asrc_ref[...], adst_ref[...], b_ref[...])
    out_ref[...] = out.astype(out_ref.dtype)


def _gat_fused_kernel(heads, x_ref, adj_ref, w_ref, a_ref, sel_ref, b_ref, out_ref):
    xp_stack, asrc_t, adst = _project_compute(
        heads, x_ref[...], w_ref[...], a_ref[...], sel_ref[...])
    mask = adj_ref[...].astype(jnp.float32) > 0.0
    out = _attend_compute(heads, mask, xp_stack, asrc_t, adst, b_ref[...])
    out_ref[...] = out.astype(out_ref.dtype)


def _gat_layer(x_pad, adj, w, att_src, att_dst, bias, *, heads, chan, tile, vmem_limit):
    n_pad, fin_pad = x_pad.shape
    hc = heads * chan
    hc_pad = _round_up(hc, LANE)

    w_p = _pad2(w, fin_pad, hc_pad, jnp.bfloat16)
    b_p = _pad2(bias, 1, hc_pad, jnp.float32)
    a_mat = jnp.zeros((hc_pad, 2 * heads), jnp.float32)
    sel = jnp.zeros((heads, hc_pad), jnp.float32)
    for h in range(heads):
        a_mat = a_mat.at[h * chan:(h + 1) * chan, h].set(att_src[h])
        a_mat = a_mat.at[h * chan:(h + 1) * chan, heads + h].set(att_dst[h])
        sel = sel.at[h, h * chan:(h + 1) * chan].set(1.0)
    a_mat = a_mat.astype(jnp.bfloat16)

    grid_n = n_pad // tile
    rows = lambda i: (i, 0)
    const2 = lambda i: (0, 0)
    cparams = pltpu.CompilerParams(dimension_semantics=("parallel",),
                                   vmem_limit_bytes=vmem_limit)

    if grid_n == 1:
        # Single destination tile: fuse projection + attention into one call
        # (no extra launch or HBM round trip for xp / alpha at small N).
        return pl.pallas_call(
            functools.partial(_gat_fused_kernel, heads),
            grid=(1,),
            out_shape=jax.ShapeDtypeStruct((n_pad, hc_pad), jnp.bfloat16),
            in_specs=[pl.BlockSpec((n_pad, fin_pad), const2),
                      pl.BlockSpec((n_pad, n_pad), const2),
                      pl.BlockSpec((fin_pad, hc_pad), const2),
                      pl.BlockSpec((hc_pad, 2 * heads), const2),
                      pl.BlockSpec((heads, hc_pad), const2),
                      pl.BlockSpec((1, hc_pad), const2)],
            out_specs=pl.BlockSpec((n_pad, hc_pad), const2),
            compiler_params=cparams,
        )(x_pad, adj, w_p, a_mat, sel, b_p)

    # Stage 1: per-node projection + attention logits (hoisted out of the dst grid).
    xps, asrc, adst = pl.pallas_call(
        functools.partial(_gat_project_kernel, heads),
        grid=(grid_n,),
        out_shape=(jax.ShapeDtypeStruct((heads, n_pad, hc_pad), jnp.bfloat16),
                   jax.ShapeDtypeStruct((heads, n_pad), jnp.float32),
                   jax.ShapeDtypeStruct((n_pad, heads), jnp.float32)),
        in_specs=[pl.BlockSpec((tile, fin_pad), rows),
                  pl.BlockSpec((fin_pad, hc_pad), const2),
                  pl.BlockSpec((hc_pad, 2 * heads), const2),
                  pl.BlockSpec((heads, hc_pad), const2)],
        out_specs=(pl.BlockSpec((heads, tile, hc_pad), lambda i: (0, i, 0)),
                   pl.BlockSpec((heads, tile), lambda i: (0, i)),
                   pl.BlockSpec((tile, heads), rows)),
        compiler_params=cparams,
    )(x_pad, w_p, a_mat, sel)

    # Stage 2: masked softmax + aggregation, tiled over destination rows.
    return pl.pallas_call(
        functools.partial(_gat_attend_kernel, heads),
        grid=(grid_n,),
        out_shape=jax.ShapeDtypeStruct((n_pad, hc_pad), jnp.bfloat16),
        in_specs=[pl.BlockSpec((tile, n_pad), rows),                         # adj (streamed)
                  pl.BlockSpec((heads, n_pad, hc_pad), lambda i: (0, 0, 0)),  # xp stack (resident)
                  pl.BlockSpec((heads, n_pad), const2),                      # alpha_src^T (resident)
                  pl.BlockSpec((tile, heads), rows),                         # alpha_dst
                  pl.BlockSpec((1, hc_pad), const2)],                        # bias
        out_specs=pl.BlockSpec((tile, hc_pad), rows),
        compiler_params=cparams,
    )(adj, xps, asrc, adst, b_p)


# ---------------------------------------------------------------------------
# Embedding + Decoder head: purely row-wise MLP, tiled over node rows.
# ---------------------------------------------------------------------------
def _head_kernel(x_ref, we, be, ge, bte, wd1, bd1, gd1, btd1, wd2, bd2, wd3, bd3,
                 dec_ref, emb_ref):
    # Embedding: Linear -> (z) -> BatchNorm -> ReLU -> Dropout (eval identity)
    z = jnp.dot(x_ref[...], we[...], preferred_element_type=jnp.float32) + be[...]
    emb_ref[...] = z
    h = jnp.maximum(z * (ge[...] * BN_SCALE) + bte[...], 0.0)
    # TODO(synk): dropout layers are modeled as eval-mode identities (p has no effect).
    # Decoder: Linear -> ReLU -> BatchNorm -> Linear -> ReLU -> Linear
    d = jnp.maximum(jnp.dot(h.astype(jnp.bfloat16), wd1[...],
                            preferred_element_type=jnp.float32) + bd1[...], 0.0)
    d = d * (gd1[...] * BN_SCALE) + btd1[...]
    d = jnp.maximum(jnp.dot(d.astype(jnp.bfloat16), wd2[...],
                            preferred_element_type=jnp.float32) + bd2[...], 0.0)
    dec_ref[...] = jnp.dot(d.astype(jnp.bfloat16), wd3[...],
                           preferred_element_type=jnp.float32) + bd3[...]


def _head(x_pad, head_params, *, in_c, outc, tile, vmem_limit):
    n_pad, f_pad = x_pad.shape
    we, be, ge, bte, wd1, bd1, gd1, btd1, wd2, bd2, wd3, bd3 = head_params
    outc_pad = _round_up(outc, LANE)
    inc_pad = _round_up(in_c, LANE)
    half_pad = _round_up(max(in_c // 2, 1), LANE)

    padded = [
        _pad2(we, f_pad, outc_pad, jnp.bfloat16), _pad2(be, 1, outc_pad, jnp.float32),
        _pad2(ge, 1, outc_pad, jnp.float32), _pad2(bte, 1, outc_pad, jnp.float32),
        _pad2(wd1, outc_pad, inc_pad, jnp.bfloat16), _pad2(bd1, 1, inc_pad, jnp.float32),
        _pad2(gd1, 1, inc_pad, jnp.float32), _pad2(btd1, 1, inc_pad, jnp.float32),
        _pad2(wd2, inc_pad, half_pad, jnp.bfloat16), _pad2(bd2, 1, half_pad, jnp.float32),
        _pad2(wd3, half_pad, inc_pad, jnp.bfloat16), _pad2(bd3, 1, inc_pad, jnp.float32),
    ]
    rows = lambda i: (i, 0)
    const2 = lambda i: (0, 0)
    dec, emb = pl.pallas_call(
        _head_kernel,
        grid=(n_pad // tile,),
        out_shape=(jax.ShapeDtypeStruct((n_pad, inc_pad), jnp.float32),
                   jax.ShapeDtypeStruct((n_pad, outc_pad), jnp.float32)),
        in_specs=[pl.BlockSpec((tile, f_pad), rows)]
                 + [pl.BlockSpec(p.shape, const2) for p in padded],
        out_specs=(pl.BlockSpec((tile, inc_pad), rows),
                   pl.BlockSpec((tile, outc_pad), rows)),
        compiler_params=pltpu.CompilerParams(dimension_semantics=("parallel",),
                                             vmem_limit_bytes=vmem_limit),
    )(x_pad, *padded)
    return dec, emb


# ---------------------------------------------------------------------------
# Full forward wrapper.
# ---------------------------------------------------------------------------
def gat_autoencoder_decoder(x, edge_index, edge_weight, params, *, heads, hid, outc):
    """Returns (decoded [N, in_c] f32, embedding [N, outc] f32)."""
    del edge_weight  # GATConv(edge_dim=None) ignores edge_attr in attention.
    n, in_c = x.shape

    max_tile, vmem_limit = _tpu_budget()
    n_pad, tile = _pick_tiling(n, max_tile)

    # Dense adjacency built directly as int8: adj[i, j] = 1 iff edge j -> i or i == j.
    # Self loops on padded rows keep their (discarded) outputs finite.
    src, dst = edge_index[0], edge_index[1]
    diag = jnp.arange(n_pad, dtype=jnp.int32)
    adj = (jnp.zeros((n_pad, n_pad), jnp.int8)
           .at[dst, src].set(1)
           .at[diag, diag].set(1))

    (w1, s1, d1, b1, w2, s2, d2, b2, w3, s3, d3, b3, w4, s4, d4, b4,
     *head_params) = params

    x_pad = jnp.zeros((n_pad, _round_up(in_c, LANE)), jnp.bfloat16)
    x_pad = x_pad.at[:n, :in_c].set(x.astype(jnp.bfloat16))

    layer = functools.partial(_gat_layer, heads=heads, tile=tile, vmem_limit=vmem_limit)
    # 4 encoder layers (GATConv + F.leaky_relu), inter-layer activations kept bf16.
    x_pad = layer(x_pad, adj, w1, s1, d1, b1, chan=hid)
    x_pad = layer(x_pad, adj, w2, s2, d2, b2, chan=hid // 2)
    x_pad = layer(x_pad, adj, w3, s3, d3, b3, chan=hid * 2)
    x_pad = layer(x_pad, adj, w4, s4, d4, b4, chan=outc)

    dec, emb = _head(x_pad, head_params, in_c=in_c, outc=outc, tile=tile,
                     vmem_limit=vmem_limit)
    return dec[:n, :in_c], emb[:n, :outc]


# ---------------------------------------------------------------------------
# Parameter construction (natural torch-like shapes; weights as [in, out]).
# ---------------------------------------------------------------------------
def _xavier(key, shape):
    fan_in, fan_out = shape[0], shape[1]
    limit = (6.0 / (fan_in + fan_out)) ** 0.5
    return jax.random.uniform(key, shape, jnp.float32, -limit, limit)


def make_params(key, in_c, hid, outc, heads):
    params = []
    gat_dims = [(in_c, hid),                  # encoder1
                (hid * heads, hid // 2),      # encoder2
                (hid // 2 * heads, hid * 2),  # encoder3
                (hid * 2 * heads, outc)]      # encoder4
    for fin, c in gat_dims:
        key, k1, k2, k3 = jax.random.split(key, 4)
        params += [_xavier(k1, (fin, heads * c)),            # lin weight [Fin, H*C]
                   _xavier(k2, (heads, c)),                  # att_src    [H, C]
                   _xavier(k3, (heads, c)),                  # att_dst    [H, C]
                   jnp.zeros((1, heads * c), jnp.float32)]   # bias
    # Embedding: Linear(outc*heads -> outc, bias), BatchNorm1d(outc)
    key, k1 = jax.random.split(key)
    params += [_xavier(k1, (outc * heads, outc)),
               jnp.zeros((1, outc), jnp.float32),
               jnp.ones((1, outc), jnp.float32),
               jnp.zeros((1, outc), jnp.float32)]
    # Decoder: Linear(outc->in_c), BN(in_c), Linear(in_c->in_c//2), Linear(in_c//2->in_c)
    key, k1, k2, k3 = jax.random.split(key, 4)
    params += [_xavier(k1, (outc, in_c)),
               jnp.zeros((1, in_c), jnp.float32),
               jnp.ones((1, in_c), jnp.float32),
               jnp.zeros((1, in_c), jnp.float32),
               _xavier(k2, (in_c, in_c // 2)),
               jnp.zeros((1, in_c // 2), jnp.float32),
               _xavier(k3, (in_c // 2, in_c)),
               jnp.zeros((1, in_c), jnp.float32)]
    return params


if __name__ == "__main__":
    IN_C, HID, OUT_C, HEADS = 16, 8, 8, 4

    key = jax.random.PRNGKey(0)
    kx1, kw1, kp, kx2 = jax.random.split(key, 4)

    params = make_params(kp, IN_C, HID, OUT_C, HEADS)
    fwd_fn = jax.jit(functools.partial(gat_autoencoder_decoder,
                                       heads=HEADS, hid=HID, outc=OUT_C))

    def ring_edges(n):
        f = jnp.arange(n, dtype=jnp.int32)
        b = (f + 1) % n
        return jnp.stack([jnp.concatenate([f, b]), jnp.concatenate([b, f])])  # [2, 2n]

    # Small graph -> single-tile fused layer kernels.
    n1 = 16
    x1 = jax.random.normal(kx1, (n1, IN_C), jnp.float32)
    e1 = ring_edges(n1)
    ew1 = jax.random.uniform(kw1, (e1.shape[1],), jnp.float32)
    dec1, emb1 = fwd_fn(x1, e1, ew1, params)
    jax.block_until_ready((dec1, emb1))
    assert dec1.shape == (n1, IN_C) and emb1.shape == (n1, OUT_C)
    assert bool(jnp.isfinite(dec1).all()) and bool(jnp.isfinite(emb1).all())

    # Medium graph -> hoisted projection + row-tiled attention path (grid > 1).
    n2 = 200
    x2 = jax.random.normal(kx2, (n2, IN_C), jnp.float32)
    e2 = ring_edges(n2)
    ew2 = jnp.ones((e2.shape[1],), jnp.float32)
    dec2, emb2 = fwd_fn(x2, e2, ew2, params)
    jax.block_until_ready((dec2, emb2))
    assert dec2.shape == (n2, IN_C) and emb2.shape == (n2, OUT_C)
    assert bool(jnp.isfinite(dec2).all()) and bool(jnp.isfinite(emb2).all())

    print("KERNEL_OK")
</pallas_src>

<mosaic_0001>
module attributes {stable_mosaic.version = 11 : i64} {
  func.func @_gat_fused_kernel(%arg0: i32, %arg1: memref<16x128xbf16, #tpu.memory_space<vmem>>, %arg2: memref<16x16xi8, #tpu.memory_space<vmem>>, %arg3: memref<128x128xbf16, #tpu.memory_space<vmem>>, %arg4: memref<128x8xbf16, #tpu.memory_space<vmem>>, %arg5: memref<4x128xf32, #tpu.memory_space<vmem>>, %arg6: memref<1x128xf32, #tpu.memory_space<vmem>>, %arg7: memref<16x128xbf16, #tpu.memory_space<vmem>>) attributes {dimension_semantics = [#tpu.dimension_semantics<parallel>], iteration_bounds = array<i64: 1>, scalar_prefetch = 0 : i64, scratch_operands = 0 : i64, tpu.core_type = #tpu.core_type<tc>, window_params = [{pipeline_mode = #tpu.pipeline_mode<synchronous>, transform_indices = @transform_0, window_bounds = array<i64: 16, 128>}, {pipeline_mode = #tpu.pipeline_mode<synchronous>, transform_indices = @transform_1, window_bounds = array<i64: 16, 16>}, {pipeline_mode = #tpu.pipeline_mode<synchronous>, transform_indices = @transform_2, window_bounds = array<i64: 128, 128>}, {pipeline_mode = #tpu.pipeline_mode<synchronous>, transform_indices = @transform_3, window_bounds = array<i64: 128, 8>}, {pipeline_mode = #tpu.pipeline_mode<synchronous>, transform_indices = @transform_4, window_bounds = array<i64: 4, 128>}, {pipeline_mode = #tpu.pipeline_mode<synchronous>, transform_indices = @transform_5, window_bounds = array<i64: 1, 128>}, {pipeline_mode = #tpu.pipeline_mode<synchronous>, transform_indices = @transform_6, window_bounds = array<i64: 16, 128>}]} {
    %c0 = arith.constant 0 : index
    %c0_0 = arith.constant 0 : index
    %0 = vector.load %arg1[%c0, %c0_0] : memref<16x128xbf16, #tpu.memory_space<vmem>>, vector<16x128xbf16>
    %c0_1 = arith.constant 0 : index
    %c0_2 = arith.constant 0 : index
    %1 = vector.load %arg3[%c0_1, %c0_2] : memref<128x128xbf16, #tpu.memory_space<vmem>>, vector<128x128xbf16>
    %c0_3 = arith.constant 0 : index
    %c0_4 = arith.constant 0 : index
    %2 = vector.load %arg4[%c0_3, %c0_4] : memref<128x8xbf16, #tpu.memory_space<vmem>>, vector<128x8xbf16>
    %c0_5 = arith.constant 0 : index
    %c0_6 = arith.constant 0 : index
    %3 = vector.load %arg5[%c0_5, %c0_6] : memref<4x128xf32, #tpu.memory_space<vmem>>, vector<4x128xf32>
    %cst = arith.constant dense<0.000000e+00> : vector<16x128xf32>
    %4 = tpu.matmul %0, %1, %cst {dimension_numbers = #tpu.dot_dimension_numbers<[1], [0], [0], [1], [0, 0, 1, 1], [], []>} : vector<16x128xbf16>, vector<128x128xbf16>, vector<16x128xf32> -> vector<16x128xf32>
    %5 = arith.truncf %4 : vector<16x128xf32> to vector<16x128xbf16>
    %cst_7 = arith.constant dense<0.000000e+00> : vector<16x8xf32>
    %6 = tpu.matmul %5, %2, %cst_7 {dimension_numbers = #tpu.dot_dimension_numbers<[1], [0], [0], [1], [0, 0, 1, 1], [], []>} : vector<16x128xbf16>, vector<128x8xbf16>, vector<16x8xf32> -> vector<16x8xf32>
    %7 = vector.extract_strided_slice %6 {offsets = [0, 0], sizes = [16, 4], strides = [1, 1]} : vector<16x8xf32> to vector<16x4xf32>
    %8 = tpu.transpose %7, [1, 0] : vector<16x4xf32> -> vector<4x16xf32>
    %9 = vector.extract_strided_slice %6 {offsets = [0, 4], sizes = [16, 4], strides = [1, 1]} : vector<16x8xf32> to vector<16x4xf32>
    %10 = vector.extract_strided_slice %3 {offsets = [0, 0], sizes = [1, 128], strides = [1, 1]} : vector<4x128xf32> to vector<1x128xf32>
    %11 = vector.broadcast %10 : vector<1x128xf32> to vector<16x128xf32>
    %12 = arith.mulf %4, %11 : vector<16x128xf32>
    %13 = arith.truncf %12 : vector<16x128xf32> to vector<16x128xbf16>
    %14 = vector.extract_strided_slice %3 {offsets = [1, 0], sizes = [1, 128], strides = [1, 1]} : vector<4x128xf32> to vector<1x128xf32>
    %15 = vector.broadcast %14 : vector<1x128xf32> to vector<16x128xf32>
    %16 = arith.mulf %4, %15 : vector<16x128xf32>
    %17 = arith.truncf %16 : vector<16x128xf32> to vector<16x128xbf16>
    %18 = vector.extract_strided_slice %3 {offsets = [2, 0], sizes = [1, 128], strides = [1, 1]} : vector<4x128xf32> to vector<1x128xf32>
    %19 = vector.broadcast %18 : vector<1x128xf32> to vector<16x128xf32>
    %20 = arith.mulf %4, %19 : vector<16x128xf32>
    %21 = arith.truncf %20 : vector<16x128xf32> to vector<16x128xbf16>
    %22 = vector.extract_strided_slice %3 {offsets = [3, 0], sizes = [1, 128], strides = [1, 1]} : vector<4x128xf32> to vector<1x128xf32>
    %23 = vector.broadcast %22 : vector<1x128xf32> to vector<16x128xf32>
    %24 = arith.mulf %4, %23 : vector<16x128xf32>
    %25 = arith.truncf %24 : vector<16x128xf32> to vector<16x128xbf16>
    %c0_8 = arith.constant 0 : index
    %c0_9 = arith.constant 0 : index
    %26 = vector.load %arg2[%c0_8, %c0_9] : memref<16x16xi8, #tpu.memory_space<vmem>>, vector<16x16xi8>
    %27 = arith.sitofp %26 : vector<16x16xi8> to vector<16x16xf32>
    %cst_10 = arith.constant 0.000000e+00 : f32
    %28 = vector.broadcast %cst_10 : f32 to vector<16x16xf32>
    %29 = arith.cmpf ogt, %27, %28 : vector<16x16xf32>
    %c0_11 = arith.constant 0 : index
    %c0_12 = arith.constant 0 : index
    %30 = vector.load %arg6[%c0_11, %c0_12] : memref<1x128xf32, #tpu.memory_space<vmem>>, vector<1x128xf32>
    %31 = vector.extract_strided_slice %9 {offsets = [0, 0], sizes = [16, 1], strides = [1, 1]} : vector<16x4xf32> to vector<16x1xf32>
    %32 = vector.extract_strided_slice %8 {offsets = [0, 0], sizes = [1, 16], strides = [1, 1]} : vector<4x16xf32> to vector<1x16xf32>
    %33 = vector.broadcast %31 : vector<16x1xf32> to vector<16x16xf32>
    %34 = vector.broadcast %32 : vector<1x16xf32> to vector<16x16xf32>
    %35 = arith.addf %33, %34 : vector<16x16xf32>
    %cst_13 = arith.constant 0.000000e+00 : f32
    %36 = vector.broadcast %cst_13 : f32 to vector<16x16xf32>
    %37 = arith.cmpf ogt, %35, %36 : vector<16x16xf32>
    %cst_14 = arith.constant 2.000000e-01 : f32
    %38 = vector.broadcast %cst_14 : f32 to vector<16x16xf32>
    %39 = arith.mulf %38, %35 : vector<16x16xf32>
    %40 = arith.select %37, %35, %39 : vector<16x16xi1>, vector<16x16xf32>
    %cst_15 = arith.constant -1.000000e+30 : f32
    %41 = vector.broadcast %cst_15 : f32 to vector<16x16xf32>
    %42 = arith.select %29, %40, %41 : vector<16x16xi1>, vector<16x16xf32>
    %cst_16 = arith.constant dense<0xFF800000> : vector<16xf32>
    %43 = vector.multi_reduction <maximumf>, %42, %cst_16 [1] : vector<16x16xf32> to vector<16xf32>
    %44 = vector.shape_cast %43 : vector<16xf32> to vector<16x1xf32>
    %45 = vector.broadcast %44 : vector<16x1xf32> to vector<16x16xf32>
    %46 = arith.subf %42, %45 : vector<16x16xf32>
    %47 = math.exp %46 : vector<16x16xf32>
    %cst_17 = arith.constant dense<0.000000e+00> : vector<16xf32>
    %48 = vector.multi_reduction <add>, %47, %cst_17 [1] : vector<16x16xf32> to vector<16xf32>
    %49 = vector.shape_cast %48 : vector<16xf32> to vector<16x1xf32>
    %50 = tpu.reciprocal %49 : vector<16x1xf32> -> vector<16x1xf32>
    %51 = vector.broadcast %50 : vector<16x1xf32> to vector<16x16xf32>
    %52 = arith.mulf %47, %51 : vector<16x16xf32>
    %53 = arith.truncf %52 : vector<16x16xf32> to vector<16x16xbf16>
    %cst_18 = arith.constant dense<0.000000e+00> : vector<16x128xf32>
    %54 = tpu.matmul %53, %13, %cst_18 {dimension_numbers = #tpu.dot_dimension_numbers<[1], [0], [0], [1], [0, 0, 1, 1], [], []>} : vector<16x16xbf16>, vector<16x128xbf16>, vector<16x128xf32> -> vector<16x128xf32>
    %55 = vector.extract_strided_slice %9 {offsets = [0, 1], sizes = [16, 1], strides = [1, 1]} : vector<16x4xf32> to vector<16x1xf32>
    %56 = vector.extract_strided_slice %8 {offsets = [1, 0], sizes = [1, 16], strides = [1, 1]} : vector<4x16xf32> to vector<1x16xf32>
    %57 = vector.broadcast %55 : vector<16x1xf32> to vector<16x16xf32>
    %58 = vector.broadcast %56 : vector<1x16xf32> to vector<16x16xf32>
    %59 = arith.addf %57, %58 : vector<16x16xf32>
    %cst_19 = arith.constant 0.000000e+00 : f32
    %60 = vector.broadcast %cst_19 : f32 to vector<16x16xf32>
    %61 = arith.cmpf ogt, %59, %60 : vector<16x16xf32>
    %cst_20 = arith.constant 2.000000e-01 : f32
    %62 = vector.broadcast %cst_20 : f32 to vector<16x16xf32>
    %63 = arith.mulf %62, %59 : vector<16x16xf32>
    %64 = arith.select %61, %59, %63 : vector<16x16xi1>, vector<16x16xf32>
    %cst_21 = arith.constant -1.000000e+30 : f32
    %65 = vector.broadcast %cst_21 : f32 to vector<16x16xf32>
    %66 = arith.select %29, %64, %65 : vector<16x16xi1>, vector<16x16xf32>
    %cst_22 = arith.constant dense<0xFF800000> : vector<16xf32>
    %67 = vector.multi_reduction <maximumf>, %66, %cst_22 [1] : vector<16x16xf32> to vector<16xf32>
    %68 = vector.shape_cast %67 : vector<16xf32> to vector<16x1xf32>
    %69 = vector.broadcast %68 : vector<16x1xf32> to vector<16x16xf32>
    %70 = arith.subf %66, %69 : vector<16x16xf32>
    %71 = math.exp %70 : vector<16x16xf32>
    %cst_23 = arith.constant dense<0.000000e+00> : vector<16xf32>
    %72 = vector.multi_reduction <add>, %71, %cst_23 [1] : vector<16x16xf32> to vector<16xf32>
    %73 = vector.shape_cast %72 : vector<16xf32> to vector<16x1xf32>
    %74 = tpu.reciprocal %73 : vector<16x1xf32> -> vector<16x1xf32>
    %75 = vector.broadcast %74 : vector<16x1xf32> to vector<16x16xf32>
    %76 = arith.mulf %71, %75 : vector<16x16xf32>
    %77 = arith.truncf %76 : vector<16x16xf32> to vector<16x16xbf16>
    %cst_24 = arith.constant dense<0.000000e+00> : vector<16x128xf32>
    %78 = tpu.matmul %77, %17, %cst_24 {dimension_numbers = #tpu.dot_dimension_numbers<[1], [0], [0], [1], [0, 0, 1, 1], [], []>} : vector<16x16xbf16>, vector<16x128xbf16>, vector<16x128xf32> -> vector<16x128xf32>
    %79 = arith.addf %54, %78 : vector<16x128xf32>
    %80 = vector.extract_strided_slice %9 {offsets = [0, 2], sizes = [16, 1], strides = [1, 1]} : vector<16x4xf32> to vector<16x1xf32>
    %81 = vector.extract_strided_slice %8 {offsets = [2, 0], sizes = [1, 16], strides = [1, 1]} : vector<4x16xf32> to vector<1x16xf32>
    %82 = vector.broadcast %80 : vector<16x1xf32> to vector<16x16xf32>
    %83 = vector.broadcast %81 : vector<1x16xf32> to vector<16x16xf32>
    %84 = arith.addf %82, %83 : vector<16x16xf32>
    %cst_25 = arith.constant 0.000000e+00 : f32
    %85 = vector.broadcast %cst_25 : f32 to vector<16x16xf32>
    %86 = arith.cmpf ogt, %84, %85 : vector<16x16xf32>
    %cst_26 = arith.constant 2.000000e-01 : f32
    %87 = vector.broadcast %cst_26 : f32 to vector<16x16xf32>
    %88 = arith.mulf %87, %84 : vector<16x16xf32>
    %89 = arith.select %86, %84, %88 : vector<16x16xi1>, vector<16x16xf32>
    %cst_27 = arith.constant -1.000000e+30 : f32
    %90 = vector.broadcast %cst_27 : f32 to vector<16x16xf32>
    %91 = arith.select %29, %89, %90 : vector<16x16xi1>, vector<16x16xf32>
    %cst_28 = arith.constant dense<0xFF800000> : vector<16xf32>
    %92 = vector.multi_reduction <maximumf>, %91, %cst_28 [1] : vector<16x16xf32> to vector<16xf32>
    %93 = vector.shape_cast %92 : vector<16xf32> to vector<16x1xf32>
    %94 = vector.broadcast %93 : vector<16x1xf32> to vector<16x16xf32>
    %95 = arith.subf %91, %94 : vector<16x16xf32>
    %96 = math.exp %95 : vector<16x16xf32>
    %cst_29 = arith.constant dense<0.000000e+00> : vector<16xf32>
    %97 = vector.multi_reduction <add>, %96, %cst_29 [1] : vector<16x16xf32> to vector<16xf32>
    %98 = vector.shape_cast %97 : vector<16xf32> to vector<16x1xf32>
    %99 = tpu.reciprocal %98 : vector<16x1xf32> -> vector<16x1xf32>
    %100 = vector.broadcast %99 : vector<16x1xf32> to vector<16x16xf32>
    %101 = arith.mulf %96, %100 : vector<16x16xf32>
    %102 = arith.truncf %101 : vector<16x16xf32> to vector<16x16xbf16>
    %cst_30 = arith.constant dense<0.000000e+00> : vector<16x128xf32>
    %103 = tpu.matmul %102, %21, %cst_30 {dimension_numbers = #tpu.dot_dimension_numbers<[1], [0], [0], [1], [0, 0, 1, 1], [], []>} : vector<16x16xbf16>, vector<16x128xbf16>, vector<16x128xf32> -> vector<16x128xf32>
    %104 = arith.addf %79, %103 : vector<16x128xf32>
    %105 = vector.extract_strided_slice %9 {offsets = [0, 3], sizes = [16, 1], strides = [1, 1]} : vector<16x4xf32> to vector<16x1xf32>
    %106 = vector.extract_strided_slice %8 {offsets = [3, 0], sizes = [1, 16], strides = [1, 1]} : vector<4x16xf32> to vector<1x16xf32>
    %107 = vector.broadcast %105 : vector<16x1xf32> to vector<16x16xf32>
    %108 = vector.broadcast %106 : vector<1x16xf32> to vector<16x16xf32>
    %109 = arith.addf %107, %108 : vector<16x16xf32>
    %cst_31 = arith.constant 0.000000e+00 : f32
    %110 = vector.broadcast %cst_31 : f32 to vector<16x16xf32>
    %111 = arith.cmpf ogt, %109, %110 : vector<16x16xf32>
    %cst_32 = arith.constant 2.000000e-01 : f32
    %112 = vector.broadcast %cst_32 : f32 to vector<16x16xf32>
    %113 = arith.mulf %112, %109 : vector<16x16xf32>
    %114 = arith.select %111, %109, %113 : vector<16x16xi1>, vector<16x16xf32>
    %cst_33 = arith.constant -1.000000e+30 : f32
    %115 = vector.broadcast %cst_33 : f32 to vector<16x16xf32>
    %116 = arith.select %29, %114, %115 : vector<16x16xi1>, vector<16x16xf32>
    %cst_34 = arith.constant dense<0xFF800000> : vector<16xf32>
    %117 = vector.multi_reduction <maximumf>, %116, %cst_34 [1] : vector<16x16xf32> to vector<16xf32>
    %118 = vector.shape_cast %117 : vector<16xf32> to vector<16x1xf32>
    %119 = vector.broadcast %118 : vector<16x1xf32> to vector<16x16xf32>
    %120 = arith.subf %116, %119 : vector<16x16xf32>
    %121 = math.exp %120 : vector<16x16xf32>
    %cst_35 = arith.constant dense<0.000000e+00> : vector<16xf32>
    %122 = vector.multi_reduction <add>, %121, %cst_35 [1] : vector<16x16xf32> to vector<16xf32>
    %123 = vector.shape_cast %122 : vector<16xf32> to vector<16x1xf32>
    %124 = tpu.reciprocal %123 : vector<16x1xf32> -> vector<16x1xf32>
    %125 = vector.broadcast %124 : vector<16x1xf32> to vector<16x16xf32>
    %126 = arith.mulf %121, %125 : vector<16x16xf32>
    %127 = arith.truncf %126 : vector<16x16xf32> to vector<16x16xbf16>
    %cst_36 = arith.constant dense<0.000000e+00> : vector<16x128xf32>
    %128 = tpu.matmul %127, %25, %cst_36 {dimension_numbers = #tpu.dot_dimension_numbers<[1], [0], [0], [1], [0, 0, 1, 1], [], []>} : vector<16x16xbf16>, vector<16x128xbf16>, vector<16x128xf32> -> vector<16x128xf32>
    %129 = arith.addf %104, %128 : vector<16x128xf32>
    %130 = vector.broadcast %30 : vector<1x128xf32> to vector<16x128xf32>
    %131 = arith.addf %129, %130 : vector<16x128xf32>
    %cst_37 = arith.constant 0.000000e+00 : f32
    %132 = vector.broadcast %cst_37 : f32 to vector<16x128xf32>
    %133 = arith.cmpf ogt, %131, %132 : vector<16x128xf32>
    %cst_38 = arith.constant 0.00999999977 : f32
    %134 = vector.broadcast %cst_38 : f32 to vector<16x128xf32>
    %135 = arith.mulf %134, %131 : vector<16x128xf32>
    %136 = arith.select %133, %131, %135 : vector<16x128xi1>, vector<16x128xf32>
    %137 = arith.truncf %136 : vector<16x128xf32> to vector<16x128xbf16>
    %c0_39 = arith.constant 0 : index
    %c0_40 = arith.constant 0 : index
    %138 = vector.load %arg7[%c0_39, %c0_40] : memref<16x128xbf16, #tpu.memory_space<vmem>>, vector<16x128xbf16>
    tpu.vector_store %arg7[%c0_39, %c0_40], %137 {strides = array<i32>} : memref<16x128xbf16, #tpu.memory_space<vmem>>, vector<16x128xbf16>,
    return
  }
  func.func @transform_0(%arg0: i32) -> (i32, i32) {
    %c0_i32 = arith.constant 0 : i32
    %c0_i32_0 = arith.constant 0 : i32
    %c0_i32_1 = arith.constant 0 : i32
    return %c0_i32, %c0_i32_0 : i32, i32
  }
  func.func @transform_1(%arg0: i32) -> (i32, i32) {
    %c0_i32 = arith.constant 0 : i32
    %c0_i32_0 = arith.constant 0 : i32
    %c0_i32_1 = arith.constant 0 : i32
    return %c0_i32, %c0_i32_0 : i32, i32
  }
  func.func @transform_2(%arg0: i32) -> (i32, i32) {
    %c0_i32 = arith.constant 0 : i32
    %c0_i32_0 = arith.constant 0 : i32
    %c0_i32_1 = arith.constant 0 : i32
    return %c0_i32, %c0_i32_0 : i32, i32
  }
  func.func @transform_3(%arg0: i32) -> (i32, i32) {
    %c0_i32 = arith.constant 0 : i32
    %c0_i32_0 = arith.constant 0 : i32
    %c0_i32_1 = arith.constant 0 : i32
    return %c0_i32, %c0_i32_0 : i32, i32
  }
  func.func @transform_4(%arg0: i32) -> (i32, i32) {
    %c0_i32 = arith.constant 0 : i32
    %c0_i32_0 = arith.constant 0 : i32
    %c0_i32_1 = arith.constant 0 : i32
    return %c0_i32, %c0_i32_0 : i32, i32
  }
  func.func @transform_5(%arg0: i32) -> (i32, i32) {
    %c0_i32 = arith.constant 0 : i32
    %c0_i32_0 = arith.constant 0 : i32
    %c0_i32_1 = arith.constant 0 : i32
    return %c0_i32, %c0_i32_0 : i32, i32
  }
  func.func @transform_6(%arg0: i32) -> (i32, i32) {
    %c0_i32 = arith.constant 0 : i32
    %c0_i32_0 = arith.constant 0 : i32
    %c0_i32_1 = arith.constant 0 : i32
    return %c0_i32, %c0_i32_0 : i32, i32
  }
}

module attributes {stable_mosaic.version = 11 : i64} {
  func.func @_head_kernel(%arg0: i32, %arg1: memref<16x128xbf16, #tpu.memory_space<vmem>>, %arg2: memref<128x128xbf16, #tpu.memory_space<vmem>>, %arg3: memref<1x128xf32, #tpu.memory_space<vmem>>, %arg4: memref<1x128xf32, #tpu.memory_space<vmem>>, %arg5: memref<1x128xf32, #tpu.memory_space<vmem>>, %arg6: memref<128x128xbf16, #tpu.memory_space<vmem>>, %arg7: memref<1x128xf32, #tpu.memory_space<vmem>>, %arg8: memref<1x128xf32, #tpu.memory_space<vmem>>, %arg9: memref<1x128xf32, #tpu.memory_space<vmem>>, %arg10: memref<128x128xbf16, #tpu.memory_space<vmem>>, %arg11: memref<1x128xf32, #tpu.memory_space<vmem>>, %arg12: memref<128x128xbf16, #tpu.memory_space<vmem>>, %arg13: memref<1x128xf32, #tpu.memory_space<vmem>>, %arg14: memref<16x128xf32, #tpu.memory_space<vmem>>, %arg15: memref<16x128xf32, #tpu.memory_space<vmem>>) attributes {dimension_semantics = [#tpu.dimension_semantics<parallel>], iteration_bounds = array<i64: 1>, scalar_prefetch = 0 : i64, scratch_operands = 0 : i64, tpu.core_type = #tpu.core_type<tc>, window_params = [{transform_indices = @transform_0, window_bounds = array<i64: 16, 128>}, {pipeline_mode = #tpu.pipeline_mode<synchronous>, transform_indices = @transform_1, window_bounds = array<i64: 128, 128>}, {pipeline_mode = #tpu.pipeline_mode<synchronous>, transform_indices = @transform_2, window_bounds = array<i64: 1, 128>}, {pipeline_mode = #tpu.pipeline_mode<synchronous>, transform_indices = @transform_3, window_bounds = array<i64: 1, 128>}, {pipeline_mode = #tpu.pipeline_mode<synchronous>, transform_indices = @transform_4, window_bounds = array<i64: 1, 128>}, {pipeline_mode = #tpu.pipeline_mode<synchronous>, transform_indices = @transform_5, window_bounds = array<i64: 128, 128>}, {pipeline_mode = #tpu.pipeline_mode<synchronous>, transform_indices = @transform_6, window_bounds = array<i64: 1, 128>}, {pipeline_mode = #tpu.pipeline_mode<synchronous>, transform_indices = @transform_7, window_bounds = array<i64: 1, 128>}, {pipeline_mode = #tpu.pipeline_mode<synchronous>, transform_indices = @transform_8, window_bounds = array<i64: 1, 128>}, {pipeline_mode = #tpu.pipeline_mode<synchronous>, transform_indices = @transform_9, window_bounds = array<i64: 128, 128>}, {pipeline_mode = #tpu.pipeline_mode<synchronous>, transform_indices = @transform_10, window_bounds = array<i64: 1, 128>}, {pipeline_mode = #tpu.pipeline_mode<synchronous>, transform_indices = @transform_11, window_bounds = array<i64: 128, 128>}, {pipeline_mode = #tpu.pipeline_mode<synchronous>, transform_indices = @transform_12, window_bounds = array<i64: 1, 128>}, {transform_indices = @transform_13, window_bounds = array<i64: 16, 128>}, {transform_indices = @transform_14, window_bounds = array<i64: 16, 128>}]} {
    %c0 = arith.constant 0 : index
    %c0_0 = arith.constant 0 : index
    %0 = vector.load %arg1[%c0, %c0_0] : memref<16x128xbf16, #tpu.memory_space<vmem>>, vector<16x128xbf16>
    %c0_1 = arith.constant 0 : index
    %c0_2 = arith.constant 0 : index
    %1 = vector.load %arg2[%c0_1, %c0_2] : memref<128x128xbf16, #tpu.memory_space<vmem>>, vector<128x128xbf16>
    %cst = arith.constant dense<0.000000e+00> : vector<16x128xf32>
    %2 = tpu.matmul %0, %1, %cst {dimension_numbers = #tpu.dot_dimension_numbers<[1], [0], [0], [1], [0, 0, 1, 1], [], []>} : vector<16x128xbf16>, vector<128x128xbf16>, vector<16x128xf32> -> vector<16x128xf32>
    %c0_3 = arith.constant 0 : index
    %c0_4 = arith.constant 0 : index
    %3 = vector.load %arg3[%c0_3, %c0_4] : memref<1x128xf32, #tpu.memory_space<vmem>>, vector<1x128xf32>
    %4 = vector.broadcast %3 : vector<1x128xf32> to vector<16x128xf32>
    %5 = arith.addf %2, %4 : vector<16x128xf32>
    %c0_5 = arith.constant 0 : index
    %c0_6 = arith.constant 0 : index
    %6 = vector.load %arg15[%c0_5, %c0_6] : memref<16x128xf32, #tpu.memory_space<vmem>>, vector<16x128xf32>
    tpu.vector_store %arg15[%c0_5, %c0_6], %5 {strides = array<i32>} : memref<16x128xf32, #tpu.memory_space<vmem>>, vector<16x128xf32>,
    %c0_7 = arith.constant 0 : index
    %c0_8 = arith.constant 0 : index
    %7 = vector.load %arg4[%c0_7, %c0_8] : memref<1x128xf32, #tpu.memory_space<vmem>>, vector<1x128xf32>
    %cst_9 = arith.constant 0.999994993 : f32
    %8 = vector.broadcast %cst_9 : f32 to vector<1x128xf32>
    %9 = arith.mulf %7, %8 : vector<1x128xf32>
    %10 = vector.broadcast %9 : vector<1x128xf32> to vector<16x128xf32>
    %11 = arith.mulf %5, %10 : vector<16x128xf32>
    %c0_10 = arith.constant 0 : index
    %c0_11 = arith.constant 0 : index
    %12 = vector.load %arg5[%c0_10, %c0_11] : memref<1x128xf32, #tpu.memory_space<vmem>>, vector<1x128xf32>
    %13 = vector.broadcast %12 : vector<1x128xf32> to vector<16x128xf32>
    %14 = arith.addf %11, %13 : vector<16x128xf32>
    %cst_12 = arith.constant 0.000000e+00 : f32
    %15 = vector.broadcast %cst_12 : f32 to vector<16x128xf32>
    %16 = arith.maximumf %14, %15 : vector<16x128xf32>
    %17 = arith.truncf %16 : vector<16x128xf32> to vector<16x128xbf16>
    %c0_13 = arith.constant 0 : index
    %c0_14 = arith.constant 0 : index
    %18 = vector.load %arg6[%c0_13, %c0_14] : memref<128x128xbf16, #tpu.memory_space<vmem>>, vector<128x128xbf16>
    %cst_15 = arith.constant dense<0.000000e+00> : vector<16x128xf32>
    %19 = tpu.matmul %17, %18, %cst_15 {dimension_numbers = #tpu.dot_dimension_numbers<[1], [0], [0], [1], [0, 0, 1, 1], [], []>} : vector<16x128xbf16>, vector<128x128xbf16>, vector<16x128xf32> -> vector<16x128xf32>
    %c0_16 = arith.constant 0 : index
    %c0_17 = arith.constant 0 : index
    %20 = vector.load %arg7[%c0_16, %c0_17] : memref<1x128xf32, #tpu.memory_space<vmem>>, vector<1x128xf32>
    %21 = vector.broadcast %20 : vector<1x128xf32> to vector<16x128xf32>
    %22 = arith.addf %19, %21 : vector<16x128xf32>
    %cst_18 = arith.constant 0.000000e+00 : f32
    %23 = vector.broadcast %cst_18 : f32 to vector<16x128xf32>
    %24 = arith.maximumf %22, %23 : vector<16x128xf32>
    %c0_19 = arith.constant 0 : index
    %c0_20 = arith.constant 0 : index
    %25 = vector.load %arg8[%c0_19, %c0_20] : memref<1x128xf32, #tpu.memory_space<vmem>>, vector<1x128xf32>
    %cst_21 = arith.constant 0.999994993 : f32
    %26 = vector.broadcast %cst_21 : f32 to vector<1x128xf32>
    %27 = arith.mulf %25, %26 : vector<1x128xf32>
    %28 = vector.broadcast %27 : vector<1x128xf32> to vector<16x128xf32>
    %29 = arith.mulf %24, %28 : vector<16x128xf32>
    %c0_22 = arith.constant 0 : index
    %c0_23 = arith.constant 0 : index
    %30 = vector.load %arg9[%c0_22, %c0_23] : memref<1x128xf32, #tpu.memory_space<vmem>>, vector<1x128xf32>
    %31 = vector.broadcast %30 : vector<1x128xf32> to vector<16x128xf32>
    %32 = arith.addf %29, %31 : vector<16x128xf32>
    %33 = arith.truncf %32 : vector<16x128xf32> to vector<16x128xbf16>
    %c0_24 = arith.constant 0 : index
    %c0_25 = arith.constant 0 : index
    %34 = vector.load %arg10[%c0_24, %c0_25] : memref<128x128xbf16, #tpu.memory_space<vmem>>, vector<128x128xbf16>
    %cst_26 = arith.constant dense<0.000000e+00> : vector<16x128xf32>
    %35 = tpu.matmul %33, %34, %cst_26 {dimension_numbers = #tpu.dot_dimension_numbers<[1], [0], [0], [1], [0, 0, 1, 1], [], []>} : vector<16x128xbf16>, vector<128x128xbf16>, vector<16x128xf32> -> vector<16x128xf32>
    %c0_27 = arith.constant 0 : index
    %c0_28 = arith.constant 0 : index
    %36 = vector.load %arg11[%c0_27, %c0_28] : memref<1x128xf32, #tpu.memory_space<vmem>>, vector<1x128xf32>
    %37 = vector.broadcast %36 : vector<1x128xf32> to vector<16x128xf32>
    %38 = arith.addf %35, %37 : vector<16x128xf32>
    %cst_29 = arith.constant 0.000000e+00 : f32
    %39 = vector.broadcast %cst_29 : f32 to vector<16x128xf32>
    %40 = arith.maximumf %38, %39 : vector<16x128xf32>
    %41 = arith.truncf %40 : vector<16x128xf32> to vector<16x128xbf16>
    %c0_30 = arith.constant 0 : index
    %c0_31 = arith.constant 0 : index
    %42 = vector.load %arg12[%c0_30, %c0_31] : memref<128x128xbf16, #tpu.memory_space<vmem>>, vector<128x128xbf16>
    %cst_32 = arith.constant dense<0.000000e+00> : vector<16x128xf32>
    %43 = tpu.matmul %41, %42, %cst_32 {dimension_numbers = #tpu.dot_dimension_numbers<[1], [0], [0], [1], [0, 0, 1, 1], [], []>} : vector<16x128xbf16>, vector<128x128xbf16>, vector<16x128xf32> -> vector<16x128xf32>
    %c0_33 = arith.constant 0 : index
    %c0_34 = arith.constant 0 : index
    %44 = vector.load %arg13[%c0_33, %c0_34] : memref<1x128xf32, #tpu.memory_space<vmem>>, vector<1x128xf32>
    %45 = vector.broadcast %44 : vector<1x128xf32> to vector<16x128xf32>
    %46 = arith.addf %43, %45 : vector<16x128xf32>
    %c0_35 = arith.constant 0 : index
    %c0_36 = arith.constant 0 : index
    %47 = vector.load %arg14[%c0_35, %c0_36] : memref<16x128xf32, #tpu.memory_space<vmem>>, vector<16x128xf32>
    tpu.vector_store %arg14[%c0_35, %c0_36], %46 {strides = array<i32>} : memref<16x128xf32, #tpu.memory_space<vmem>>, vector<16x128xf32>,
    return
  }
  func.func @transform_0(%arg0: i32) -> (i32, i32) {
    %c0_i32 = arith.constant 0 : i32
    %c0_i32_0 = arith.constant 0 : i32
    return %arg0, %c0_i32 : i32, i32
  }
  func.func @transform_1(%arg0: i32) -> (i32, i32) {
    %c0_i32 = arith.constant 0 : i32
    %c0_i32_0 = arith.constant 0 : i32
    %c0_i32_1 = arith.constant 0 : i32
    return %c0_i32, %c0_i32_0 : i32, i32
  }
  func.func @transform_2(%arg0: i32) -> (i32, i32) {
    %c0_i32 = arith.constant 0 : i32
    %c0_i32_0 = arith.constant 0 : i32
    %c0_i32_1 = arith.constant 0 : i32
    return %c0_i32, %c0_i32_0 : i32, i32
  }
  func.func @transform_3(%arg0: i32) -> (i32, i32) {
    %c0_i32 = arith.constant 0 : i32
    %c0_i32_0 = arith.constant 0 : i32
    %c0_i32_1 = arith.constant 0 : i32
    return %c0_i32, %c0_i32_0 : i32, i32
  }
  func.func @transform_4(%arg0: i32) -> (i32, i32) {
    %c0_i32 = arith.constant 0 : i32
    %c0_i32_0 = arith.constant 0 : i32
    %c0_i32_1 = arith.constant 0 : i32
    return %c0_i32, %c0_i32_0 : i32, i32
  }
  func.func @transform_5(%arg0: i32) -> (i32, i32) {
    %c0_i32 = arith.constant 0 : i32
    %c0_i32_0 = arith.constant 0 : i32
    %c0_i32_1 = arith.constant 0 : i32
    return %c0_i32, %c0_i32_0 : i32, i32
  }
  func.func @transform_6(%arg0: i32) -> (i32, i32) {
    %c0_i32 = arith.constant 0 : i32
    %c0_i32_0 = arith.constant 0 : i32
    %c0_i32_1 = arith.constant 0 : i32
    return %c0_i32, %c0_i32_0 : i32, i32
  }
  func.func @transform_7(%arg0: i32) -> (i32, i32) {
    %c0_i32 = arith.constant 0 : i32
    %c0_i32_0 = arith.constant 0 : i32
    %c0_i32_1 = arith.constant 0 : i32
    return %c0_i32, %c0_i32_0 : i32, i32
  }
  func.func @transform_8(%arg0: i32) -> (i32, i32) {
    %c0_i32 = arith.constant 0 : i32
    %c0_i32_0 = arith.constant 0 : i32
    %c0_i32_1 = arith.constant 0 : i32
    return %c0_i32, %c0_i32_0 : i32, i32
  }
  func.func @transform_9(%arg0: i32) -> (i32, i32) {
    %c0_i32 = arith.constant 0 : i32
    %c0_i32_0 = arith.constant 0 : i32
    %c0_i32_1 = arith.constant 0 : i32
    return %c0_i32, %c0_i32_0 : i32, i32
  }
  func.func @transform_10(%arg0: i32) -> (i32, i32) {
    %c0_i32 = arith.constant 0 : i32
    %c0_i32_0 = arith.constant 0 : i32
    %c0_i32_1 = arith.constant 0 : i32
    return %c0_i32, %c0_i32_0 : i32, i32
  }
  func.func @transform_11(%arg0: i32) -> (i32, i32) {
    %c0_i32 = arith.constant 0 : i32
    %c0_i32_0 = arith.constant 0 : i32
    %c0_i32_1 = arith.constant 0 : i32
    return %c0_i32, %c0_i32_0 : i32, i32
  }
  func.func @transform_12(%arg0: i32) -> (i32, i32) {
    %c0_i32 = arith.constant 0 : i32
    %c0_i32_0 = arith.constant 0 : i32
    %c0_i32_1 = arith.constant 0 : i32
    return %c0_i32, %c0_i32_0 : i32, i32
  }
  func.func @transform_13(%arg0: i32) -> (i32, i32) {
    %c0_i32 = arith.constant 0 : i32
    %c0_i32_0 = arith.constant 0 : i32
    return %arg0, %c0_i32 : i32, i32
  }
  func.func @transform_14(%arg0: i32) -> (i32, i32) {
    %c0_i32 = arith.constant 0 : i32
    %c0_i32_0 = arith.constant 0 : i32
    return %arg0, %c0_i32 : i32, i32
  }
}

</mosaic_0001>

<llo_original>
// kernel: gat_autoencoder_decoder.5
$region0: #{gat_autoencoder_decoder.5}
  #allocation0 [shape = 'u32[]', space=smem, size = 0x4, offset = 0x4, fixed_abs, tag = 'smem constant byte address 0x4 - core index']
  #allocation1 [shape = 'u32[72,128]{1,0:T(1,128)}', space=vmem, size = 0x9000, scoped, tag = 'internal scratch']
  %s0 = inlined_call_operand.vmem [shape: bf16[16,128], index: 0, kind: input, shape index: {}]
  %s1 = inlined_call_operand.vmem [shape: s8[16,16], index: 1, kind: input, shape index: {}]
  %s2 = inlined_call_operand.vmem [shape: bf16[128,128], index: 2, kind: input, shape index: {}]
  %s3 = inlined_call_operand.vmem [shape: bf16[128,8], index: 3, kind: input, shape index: {}]
  %s4 = inlined_call_operand.vmem [shape: f32[4,128], index: 4, kind: input, shape index: {}]
  %s5 = inlined_call_operand.vmem [shape: f32[1,128], index: 5, kind: input, shape index: {}]
  %s6 = inlined_call_operand.vmem [shape: bf16[16,128], index: 6, kind: output, shape index: {}]
  %s7 = sld [smem:[#allocation0]]
  $region34: #{gat_autoencoder_decoder.5} parent=0
    _
  %s9 = ssub.s32 1, %s7
  %s10 = scalar_select 0, %s9, %s7
  // Predicated region
  $region2: #{gat_autoencoder_decoder.5} parent=0 // pred_check
    _
  $region3: #{gat_autoencoder_decoder.5} parent=0 // pred_check_branch
    %12 = sbr.rel (0) target = $region5
  $region4: #{gat_autoencoder_decoder.5} parent=0 // pred_region
    _
  $region5: #{gat_autoencoder_decoder.5} parent=0 // pred_fallthru
    _
  // Predicated region
  $region6: #{gat_autoencoder_decoder.5} parent=0 // pred_check
    _
  $region7: #{gat_autoencoder_decoder.5} parent=0 // pred_check_branch
    %14 = sbr.rel (0) target = $region9
  $region8: #{gat_autoencoder_decoder.5} parent=0 // pred_region
    _
  $region9: #{gat_autoencoder_decoder.5} parent=0 // pred_fallthru
    _
  // Predicated region
  $region10: #{gat_autoencoder_decoder.5} parent=0 // pred_check
    _
  $region11: #{gat_autoencoder_decoder.5} parent=0 // pred_check_branch
    %16 = sbr.rel (0) target = $region13
  $region12: #{gat_autoencoder_decoder.5} parent=0 // pred_region
    _
  $region13: #{gat_autoencoder_decoder.5} parent=0 // pred_fallthru
    _
  // Predicated region
  $region14: #{gat_autoencoder_decoder.5} parent=0 // pred_check
    _
  $region15: #{gat_autoencoder_decoder.5} parent=0 // pred_check_branch
    %18 = sbr.rel (0) target = $region17
  $region16: #{gat_autoencoder_decoder.5} parent=0 // pred_region
    _
  $region17: #{gat_autoencoder_decoder.5} parent=0 // pred_fallthru
    _
  // Predicated region
  $region18: #{gat_autoencoder_decoder.5} parent=0 // pred_check
    _
  $region19: #{gat_autoencoder_decoder.5} parent=0 // pred_check_branch
    %20 = sbr.rel (0) target = $region21
  $region20: #{gat_autoencoder_decoder.5} parent=0 // pred_region
    _
  $region21: #{gat_autoencoder_decoder.5} parent=0 // pred_fallthru
    _
  // Predicated region
  $region22: #{gat_autoencoder_decoder.5} parent=0 // pred_check
    _
  $region23: #{gat_autoencoder_decoder.5} parent=0 // pred_check_branch
    %22 = sbr.rel (0) target = $region25
  $region24: #{gat_autoencoder_decoder.5} parent=0 // pred_region
    _
  $region25: #{gat_autoencoder_decoder.5} parent=0 // pred_fallthru
    _
  %v24 = vld [vmem:[%s0] sm:$0xf]
  %v25 = vld [vmem:[%s0 + $0x4] sm:$0xf]
  %v26 = vld [vmem:[%s2] sm:$0xf]
  %v27 = vld [vmem:[%s2 + $0x4] sm:$0xf]
  %v28 = vld [vmem:[%s2 + $0x8] sm:$0xf]
  %v29 = vld [vmem:[%s2 + $0xc] sm:$0xf]
  %v30 = vld [vmem:[%s2 + $0x10] sm:$0xf]
  %v31 = vld [vmem:[%s2 + $0x14] sm:$0xf]
  %v32 = vld [vmem:[%s2 + $0x18] sm:$0xf]
  %v33 = vld [vmem:[%s2 + $0x1c] sm:$0xf]
  %v34 = vld [vmem:[%s2 + $0x20] sm:$0xf]
  %v35 = vld [vmem:[%s2 + $0x24] sm:$0xf]
  %v36 = vld [vmem:[%s2 + $0x28] sm:$0xf]
  %v37 = vld [vmem:[%s2 + $0x2c] sm:$0xf]
  %v38 = vld [vmem:[%s2 + $0x30] sm:$0xf]
  %v39 = vld [vmem:[%s2 + $0x34] sm:$0xf]
  %v40 = vld [vmem:[%s2 + $0x38] sm:$0xf]
  %v41 = vld [vmem:[%s2 + $0x3c] sm:$0xf]
  %v42 = vld [vmem:[%s3] sm:$0xf]
  %v43 = vld [vmem:[%s3 + $0x4] sm:$0xf]
  %v44 = vld [vmem:[%s3 + $0x8] sm:$0xf]
  %v45 = vld [vmem:[%s3 + $0xc] sm:$0xf]
  %v46 = vld [vmem:[%s3 + $0x10] sm:$0xf]
  %v47 = vld [vmem:[%s3 + $0x14] sm:$0xf]
  %v48 = vld [vmem:[%s3 + $0x18] sm:$0xf]
  %v49 = vld [vmem:[%s3 + $0x1c] sm:$0xf]
  %v50 = vld [vmem:[%s3 + $0x20] sm:$0xf]
  %v51 = vld [vmem:[%s3 + $0x24] sm:$0xf]
  %v52 = vld [vmem:[%s3 + $0x28] sm:$0xf]
  %v53 = vld [vmem:[%s3 + $0x2c] sm:$0xf]
  %v54 = vld [vmem:[%s3 + $0x30] sm:$0xf]
  %v55 = vld [vmem:[%s3 + $0x34] sm:$0xf]
  %v56 = vld [vmem:[%s3 + $0x38] sm:$0xf]
  %v57 = vld [vmem:[%s3 + $0x3c] sm:$0xf]
  %v58 = vld [vmem:[%s4] sm:$0xf]
  %v61 = vunpack.c.l.b16 %v24
  %v62 = vunpack.c.l.b16 %v25
  %v63 = vpack.c.b16 %v62, %v61
  %v81 = vunpack.c.l.b16 %v26
  %v82 = vunpack.c.l.b16 %v27
  %v83 = vunpack.c.l.b16 %v28
  %v84 = vunpack.c.l.b16 %v29
  %v85 = vunpack.c.l.b16 %v30
  %v86 = vunpack.c.l.b16 %v31
  %v87 = vunpack.c.l.b16 %v32
  %v88 = vunpack.c.l.b16 %v33
  %v89 = vunpack.c.l.b16 %v34
  %v90 = vunpack.c.l.b16 %v35
  %v91 = vunpack.c.l.b16 %v36
  %v92 = vunpack.c.l.b16 %v37
  %v93 = vunpack.c.l.b16 %v38
  %v94 = vunpack.c.l.b16 %v39
  %v95 = vunpack.c.l.b16 %v40
  %v96 = vunpack.c.l.b16 %v41
  %v97 = vpack.c.b16 %v82, %v81
  %v98 = vpack.c.b16 %v84, %v83
  %v99 = vpack.c.b16 %v86, %v85
  %v100 = vpack.c.b16 %v88, %v87
  %v101 = vpack.c.b16 %v90, %v89
  %v102 = vpack.c.b16 %v92, %v91
  %v103 = vpack.c.b16 %v94, %v93
  %v104 = vpack.c.b16 %v96, %v95
  %113 = vmatpush.bf16.msra.mxu0 %v104
  %114 = vmatpush.bf16.msra.mxu0 %v103
  %115 = vmatpush.bf16.msra.mxu0 %v102
  %116 = vmatpush.bf16.msra.mxu0 %v101
  %117 = vmatpush.bf16.msra.mxu0 %v100
  %118 = vmatpush.bf16.msra.mxu0 %v99
  %119 = vmatpush.bf16.msra.mxu0 %v98
  %120 = vmatpush.bf16.msra.mxu0 %v97
  %121 = vmatmul.bf16.gmra.mxu0 %v63
  %v122 = vpop.f32.mrf.mxu0
  %v123 = vadd.f32 0.0, %v122
  %v124 = vpop.f32.mrf.mxu0
  %v125 = vadd.f32 0.0, %v124
  %126 = vdwg.mxu0
  %v127 = vpack.c.bf16 %v125, %v123
  %v144 = vunpack.c.l.b16 %v42
  %v145 = vunpack.c.l.b16 %v43
  %v146 = vunpack.c.l.b16 %v44
  %v147 = vunpack.c.l.b16 %v45
  %v148 = vunpack.c.l.b16 %v46
  %v149 = vunpack.c.l.b16 %v47
  %v150 = vunpack.c.l.b16 %v48
  %v151 = vunpack.c.l.b16 %v49
  %v152 = vunpack.c.l.b16 %v50
  %v153 = vunpack.c.l.b16 %v51
  %v154 = vunpack.c.l.b16 %v52
  %v155 = vunpack.c.l.b16 %v53
  %v156 = vunpack.c.l.b16 %v54
  %v157 = vunpack.c.l.b16 %v55
  %v158 = vunpack.c.l.b16 %v56
  %v159 = vunpack.c.l.b16 %v57
  %v160 = vpack.c.b16 %v145, %v144
  %v161 = vpack.c.b16 %v147, %v146
  %v162 = vpack.c.b16 %v149, %v148
  %v163 = vpack.c.b16 %v151, %v150
  %v164 = vpack.c.b16 %v153, %v152
  %v165 = vpack.c.b16 %v155, %v154
  %v166 = vpack.c.b16 %v157, %v156
  %v167 = vpack.c.b16 %v159, %v158
  %176 = vmatpush.bf16.msra.mxu0 %v167
  %177 = vmatpush.bf16.msra.mxu0 %v166
  %178 = vmatpush.bf16.msra.mxu0 %v165
  %179 = vmatpush.bf16.msra.mxu0 %v164
  %180 = vmatpush.bf16.msra.mxu0 %v163
  %181 = vmatpush.bf16.msra.mxu0 %v162
  %182 = vmatpush.bf16.msra.mxu0 %v161
  %183 = vmatpush.bf16.msra.mxu0 %v160
  %184 = vmatmul.bf16.gmra.mxu0 %v127
  %v185 = vpop.f32.mrf.mxu0
  %v186 = vadd.f32 0.0, %v185
  %v187 = vpop.f32.mrf.mxu0
  %v188 = vadd.f32 0.0, %v187
  %189 = vdwg.mxu0
  %190 = vxpose.xlu0.b32.start [1/16] %v186, 128
  %191 = vxpose.xlu0.b32.cont [2/16] %v188, 128
  %192 = vxpose.xlu0.b32.cont [3/16] 0.0, 128
  %193 = vxpose.xlu0.b32.cont [4/16] 0.0, 128
  %194 = vxpose.xlu0.b32.cont [5/16] 0.0, 128
  %195 = vxpose.xlu0.b32.cont [6/16] 0.0, 128
  %196 = vxpose.xlu0.b32.cont [7/16] 0.0, 128
  %197 = vxpose.xlu0.b32.cont [8/16] 0.0, 128
  %198 = vxpose.xlu0.b32.cont [9/16] 0.0, 128
  %199 = vxpose.xlu0.b32.cont [10/16] 0.0, 128
  %200 = vxpose.xlu0.b32.cont [11/16] 0.0, 128
  %201 = vxpose.xlu0.b32.cont [12/16] 0.0, 128
  %202 = vxpose.xlu0.b32.cont [13/16] 0.0, 128
  %203 = vxpose.xlu0.b32.cont [14/16] 0.0, 128
  %204 = vxpose.xlu0.b32.cont [15/16] 0.0, 128
  %205 = vxpose.xlu0.b32.end [16/16] 0.0, 128
  %v206 = vpop.trf.xlu0
  %v207 = vpop.trf.xlu0
  %v208 = vpop.trf.xlu0
  %v209 = vpop.trf.xlu0
  %v210 = vpop.trf.xlu0
  %v211 = vpop.trf.xlu0
  %v212 = vpop.trf.xlu0
  %v213 = vpop.trf.xlu0
  %v214 = vpop.trf.xlu0
  %v215 = vpop.trf.xlu0
  %v216 = vpop.trf.xlu0
  %v217 = vpop.trf.xlu0
  %v218 = vpop.trf.xlu0
  %v219 = vpop.trf.xlu0
  %v220 = vpop.trf.xlu0
  %v221 = vpop.trf.xlu0
  %v222 = vperm.slane %v58, 0
  %v223 = vmul.f32 %v123, %v222
  %v224 = vmul.f32 %v125, %v222
  %v225 = vpack.c.bf16 %v224, %v223
  %v226 = vperm.slane %v58, 1
  %v227 = vmul.f32 %v123, %v226
  %v228 = vmul.f32 %v125, %v226
  %v229 = vpack.c.bf16 %v228, %v227
  %v230 = vperm.slane %v58, 2
  %v231 = vmul.f32 %v123, %v230
  %v232 = vmul.f32 %v125, %v230
  %v233 = vpack.c.bf16 %v232, %v231
  %v234 = vperm.slane %v58, 3
  %v235 = vmul.f32 %v123, %v234
  %v236 = vmul.f32 %v125, %v234
  %v237 = vpack.c.bf16 %v236, %v235
  %v238 = vld [vmem:[%s1] sm:$0x3]
  %v239 = vld [vmem:[%s1 + $0x2] sm:$0x3]
  %v240 = vunpack.c.0.s8 %v238
  %v241 = vunpack.c.0.s8 %v239
  %v242 = vcvt.s32.f32 %v240
  %v243 = vcvt.s32.f32 %v241
  %vm244 = vcmp.gt.f32.partialorder %v242, 0.0
  %vm245 = vcmp.gt.f32.partialorder %v243, 0.0
  %v246 = vld [vmem:[%s5] sm:$0x1]
  %248 = vset.pattern.permute.xlu0 4
  %249 = vperm.xlu0 %248, %v186
  %v250 = vpop.permute.xlu0 %249
  %253 = vset.pattern.permute.xlu0 4
  %254 = vperm.xlu0 %253, %v188
  %v255 = vpop.permute.xlu0 %254
  %v257 = vperm.slane %v206, 0
  %v258 = vadd.f32 %v250, %v257
  %v259 = vadd.f32 %v255, %v257
  %vm260 = vcmp.gt.f32.partialorder %v258, 0.0
  %vm261 = vcmp.gt.f32.partialorder %v259, 0.0
  %v262 = vmul.f32 %v258, 0.2
  %v263 = vmul.f32 %v259, 0.2
  %v264 = vsel %vm260, %v258, %v262
  %v265 = vsel %vm261, %v259, %v263
  %v266 = vsel %vm244, %v264, -1e+30
  %v267 = vsel %vm245, %v265, -1e+30
  %vm268 = vcmask 130048
  %v269 = vsel %vm268, %v266, -inf
  %270 = vmax.xlane.f32.xlu0 %v269
  %v271 = vpop.xlane.xlu0 %270
  %v272 = vsel %vm268, %v267, -inf
  %273 = vmax.xlane.f32.xlu0 %v272
  %v274 = vpop.xlane.xlu0 %273
  %v275 = vsub.f32 %v266, %v271
  %v276 = vsub.f32 %v267, %v274
  %v277 = vmul.f32 %v275, 1.442695
  %v278 = vpow.pop %v277
  %v279 = vmul.f32 %v276, 1.442695
  %v280 = vpow.pop %v279
  %v281 = vsel %vm268, %v278, 0.0
  %282 = vadd.xlane.f32.xlu0 %v281
  %v283 = vpop.xlane.xlu0 %282
  %v284 = vsel %vm268, %v280, 0.0
  %285 = vadd.xlane.f32.xlu0 %v284
  %v286 = vpop.xlane.xlu0 %285
  %v287 = vrcp.pop %v283
  %v288 = vmul.f32 %v283, %v287
  %v289 = vsub.f32 1.0, %v288
  %v290 = vmul.f32 %v287, %v289
  %v291 = vadd.f32 %v287, %v290
  %vm292 = vweird.f32 %v283
  %vm293 = vweird.f32 %v287
  %vm294 = vmor %vm292, %vm293
  %v295 = vsel %vm294, %v287, %v291
  %v296 = vand.u32 2147483647, %v283
  %vm297 = vcmp.eq.f32.partialorder %v296, 8.507059e+37
  %v298 = vand.u32 %v283, 2147483648
  %v299 = vor.u32 1.1754944e-38, %v298
  %v300 = vsel %vm297, %v299, %v295
  %v301 = vrcp.pop %v286
  %v302 = vmul.f32 %v286, %v301
  %v303 = vsub.f32 1.0, %v302
  %v304 = vmul.f32 %v301, %v303
  %v305 = vadd.f32 %v301, %v304
  %vm306 = vweird.f32 %v286
  %vm307 = vweird.f32 %v301
  %vm308 = vmor %vm306, %vm307
  %v309 = vsel %vm308, %v301, %v305
  %v310 = vand.u32 2147483647, %v286
  %vm311 = vcmp.eq.f32.partialorder %v310, 8.507059e+37
  %v312 = vand.u32 %v286, 2147483648
  %v313 = vor.u32 1.1754944e-38, %v312
  %v314 = vsel %vm311, %v313, %v309
  %v315 = vmul.f32 %v278, %v300
  %v316 = vmul.f32 %v280, %v314
  %v317 = vpack.c.bf16 %v316, %v315
  %318 = vset.pattern.permute.xlu0 5
  %319 = vperm.xlu0 %318, %v186
  %v320 = vpop.permute.xlu0 %319
  %322 = vset.pattern.permute.xlu0 5
  %323 = vperm.xlu0 %322, %v188
  %v324 = vpop.permute.xlu0 %323
  %v326 = vperm.slane %v206, 1
  %v327 = vadd.f32 %v320, %v326
  %v328 = vadd.f32 %v324, %v326
  %vm329 = vcmp.gt.f32.partialorder %v327, 0.0
  %vm330 = vcmp.gt.f32.partialorder %v328, 0.0
  %v331 = vmul.f32 %v327, 0.2
  %v332 = vmul.f32 %v328, 0.2
  %v333 = vsel %vm329, %v327, %v331
  %v334 = vsel %vm330, %v328, %v332
  %v335 = vsel %vm244, %v333, -1e+30
  %v336 = vsel %vm245, %v334, -1e+30
  %v337 = vsel %vm268, %v335, -inf
  %338 = vmax.xlane.f32.xlu0 %v337
  %v339 = vpop.xlane.xlu0 %338
  %v340 = vsel %vm268, %v336, -inf
  %341 = vmax.xlane.f32.xlu0 %v340
  %v342 = vpop.xlane.xlu0 %341
  %v343 = vsub.f32 %v335, %v339
  %v344 = vsub.f32 %v336, %v342
  %v345 = vmul.f32 %v343, 1.442695
  %v346 = vpow.pop %v345
  %v347 = vmul.f32 %v344, 1.442695
  %v348 = vpow.pop %v347
  %v349 = vsel %vm268, %v346, 0.0
  %350 = vadd.xlane.f32.xlu0 %v349
  %v351 = vpop.xlane.xlu0 %350
  %v352 = vsel %vm268, %v348, 0.0
  %353 = vadd.xlane.f32.xlu0 %v352
  %v354 = vpop.xlane.xlu0 %353
  %v355 = vrcp.pop %v351
  %v356 = vmul.f32 %v351, %v355
  %v357 = vsub.f32 1.0, %v356
  %v358 = vmul.f32 %v355, %v357
  %v359 = vadd.f32 %v355, %v358
  %vm360 = vweird.f32 %v351
  %vm361 = vweird.f32 %v355
  %vm362 = vmor %vm360, %vm361
  %v363 = vsel %vm362, %v355, %v359
  %v364 = vand.u32 2147483647, %v351
  %vm365 = vcmp.eq.f32.partialorder %v364, 8.507059e+37
  %v366 = vand.u32 %v351, 2147483648
  %v367 = vor.u32 1.1754944e-38, %v366
  %v368 = vsel %vm365, %v367, %v363
  %v369 = vrcp.pop %v354
  %v370 = vmul.f32 %v354, %v369
  %v371 = vsub.f32 1.0, %v370
  %v372 = vmul.f32 %v369, %v371
  %v373 = vadd.f32 %v369, %v372
  %vm374 = vweird.f32 %v354
  %vm375 = vweird.f32 %v369
  %vm376 = vmor %vm374, %vm375
  %v377 = vsel %vm376, %v369, %v373
  %v378 = vand.u32 2147483647, %v354
  %vm379 = vcmp.eq.f32.partialorder %v378, 8.507059e+37
  %v380 = vand.u32 %v354, 2147483648
  %v381 = vor.u32 1.1754944e-38, %v380
  %v382 = vsel %vm379, %v381, %v377
  %v383 = vmul.f32 %v346, %v368
  %v384 = vmul.f32 %v348, %v382
  %v385 = vpack.c.bf16 %v384, %v383
  %v387 = vsel %vm268, %v385, 0
  %389 = vmatpush.bf16.msra.mxu0 0
  %390 = vmatpush.bf16.msra.mxu0 0
  %391 = vmatpush.bf16.msra.mxu0 0
  %392 = vmatpush.bf16.msra.mxu0 0
  %393 = vmatpush.bf16.msra.mxu0 0
  %394 = vmatpush.bf16.msra.mxu0 0
  %395 = vmatpush.bf16.msra.mxu0 0
  %396 = vmatpush.bf16.msra.mxu0 %v229
  %397 = vmatmul.bf16.gmra.mxu0 %v387
  %v398 = vpop.f32.mrf.mxu0
  %v399 = vadd.f32 0.0, %v398
  %v400 = vpop.f32.mrf.mxu0
  %v401 = vadd.f32 0.0, %v400
  %402 = vdwg.mxu0
  %v404 = vsel %vm268, %v317, 0
  %406 = vmatpush.bf16.msra.mxu0 0
  %407 = vmatpush.bf16.msra.mxu0 0
  %408 = vmatpush.bf16.msra.mxu0 0
  %409 = vmatpush.bf16.msra.mxu0 0
  %410 = vmatpush.bf16.msra.mxu0 0
  %411 = vmatpush.bf16.msra.mxu0 0
  %412 = vmatpush.bf16.msra.mxu0 0
  %413 = vmatpush.bf16.msra.mxu0 %v225
  %414 = vmatmul.bf16.gmra.mxu0 %v404
  %v415 = vpop.f32.mrf.mxu0
  %v416 = vadd.f32 %v399, %v415
  %v417 = vpop.f32.mrf.mxu0
  %v418 = vadd.f32 %v401, %v417
  %419 = vdwg.mxu0
  %420 = vset.pattern.permute.xlu0 6
  %421 = vperm.xlu0 %420, %v186
  %v422 = vpop.permute.xlu0 %421
  %424 = vset.pattern.permute.xlu0 6
  %425 = vperm.xlu0 %424, %v188
  %v426 = vpop.permute.xlu0 %425
  %v428 = vperm.slane %v206, 2
  %v429 = vadd.f32 %v422, %v428
  %v430 = vadd.f32 %v426, %v428
  %vm431 = vcmp.gt.f32.partialorder %v429, 0.0
  %vm432 = vcmp.gt.f32.partialorder %v430, 0.0
  %v433 = vmul.f32 %v429, 0.2
  %v434 = vmul.f32 %v430, 0.2
  %v435 = vsel %vm431, %v429, %v433
  %v436 = vsel %vm432, %v430, %v434
  %v437 = vsel %vm244, %v435, -1e+30
  %v438 = vsel %vm245, %v436, -1e+30
  %v439 = vsel %vm268, %v437, -inf
  %440 = vmax.xlane.f32.xlu0 %v439
  %v441 = vpop.xlane.xlu0 %440
  %v442 = vsel %vm268, %v438, -inf
  %443 = vmax.xlane.f32.xlu0 %v442
  %v444 = vpop.xlane.xlu0 %443
  %v445 = vsub.f32 %v437, %v441
  %v446 = vsub.f32 %v438, %v444
  %v447 = vmul.f32 %v445, 1.442695
  %v448 = vpow.pop %v447
  %v449 = vmul.f32 %v446, 1.442695
  %v450 = vpow.pop %v449
  %v451 = vsel %vm268, %v448, 0.0
  %452 = vadd.xlane.f32.xlu0 %v451
  %v453 = vpop.xlane.xlu0 %452
  %v454 = vsel %vm268, %v450, 0.0
  %455 = vadd.xlane.f32.xlu0 %v454
  %v456 = vpop.xlane.xlu0 %455
  %v457 = vrcp.pop %v453
  %v458 = vmul.f32 %v453, %v457
  %v459 = vsub.f32 1.0, %v458
  %v460 = vmul.f32 %v457, %v459
  %v461 = vadd.f32 %v457, %v460
  %vm462 = vweird.f32 %v453
  %vm463 = vweird.f32 %v457
  %vm464 = vmor %vm462, %vm463
  %v465 = vsel %vm464, %v457, %v461
  %v466 = vand.u32 2147483647, %v453
  %vm467 = vcmp.eq.f32.partialorder %v466, 8.507059e+37
  %v468 = vand.u32 %v453, 2147483648
  %v469 = vor.u32 1.1754944e-38, %v468
  %v470 = vsel %vm467, %v469, %v465
  %v471 = vrcp.pop %v456
  %v472 = vmul.f32 %v456, %v471
  %v473 = vsub.f32 1.0, %v472
  %v474 = vmul.f32 %v471, %v473
  %v475 = vadd.f32 %v471, %v474
  %vm476 = vweird.f32 %v456
  %vm477 = vweird.f32 %v471
  %vm478 = vmor %vm476, %vm477
  %v479 = vsel %vm478, %v471, %v475
  %v480 = vand.u32 2147483647, %v456
  %vm481 = vcmp.eq.f32.partialorder %v480, 8.507059e+37
  %v482 = vand.u32 %v456, 2147483648
  %v483 = vor.u32 1.1754944e-38, %v482
  %v484 = vsel %vm481, %v483, %v479
  %v485 = vmul.f32 %v448, %v470
  %v486 = vmul.f32 %v450, %v484
  %v487 = vpack.c.bf16 %v486, %v485
  %v489 = vsel %vm268, %v487, 0
  %491 = vmatpush.bf16.msra.mxu0 0
  %492 = vmatpush.bf16.msra.mxu0 0
  %493 = vmatpush.bf16.msra.mxu0 0
  %494 = vmatpush.bf16.msra.mxu0 0
  %495 = vmatpush.bf16.msra.mxu0 0
  %496 = vmatpush.bf16.msra.mxu0 0
  %497 = vmatpush.bf16.msra.mxu0 0
  %498 = vmatpush.bf16.msra.mxu0 %v233
  %499 = vmatmul.bf16.gmra.mxu0 %v489
  %v500 = vpop.f32.mrf.mxu0
  %v501 = vadd.f32 0.0, %v500
  %v502 = vpop.f32.mrf.mxu0
  %v503 = vadd.f32 0.0, %v502
  %504 = vdwg.mxu0
  %v505 = vadd.f32 %v416, %v501
  %v506 = vadd.f32 %v418, %v503
  %507 = vset.pattern.permute.xlu0 7
  %508 = vperm.xlu0 %507, %v186
  %v509 = vpop.permute.xlu0 %508
  %511 = vset.pattern.permute.xlu0 7
  %512 = vperm.xlu0 %511, %v188
  %v513 = vpop.permute.xlu0 %512
  %v515 = vperm.slane %v206, 3
  %v516 = vadd.f32 %v509, %v515
  %v517 = vadd.f32 %v513, %v515
  %vm518 = vcmp.gt.f32.partialorder %v516, 0.0
  %vm519 = vcmp.gt.f32.partialorder %v517, 0.0
  %v520 = vmul.f32 %v516, 0.2
  %v521 = vmul.f32 %v517, 0.2
  %v522 = vsel %vm518, %v516, %v520
  %v523 = vsel %vm519, %v517, %v521
  %v524 = vsel %vm244, %v522, -1e+30
  %v525 = vsel %vm245, %v523, -1e+30
  %v526 = vsel %vm268, %v524, -inf
  %527 = vmax.xlane.f32.xlu0 %v526
  %v528 = vpop.xlane.xlu0 %527
  %v529 = vsel %vm268, %v525, -inf
  %530 = vmax.xlane.f32.xlu0 %v529
  %v531 = vpop.xlane.xlu0 %530
  %v532 = vsub.f32 %v524, %v528
  %v533 = vsub.f32 %v525, %v531
  %v534 = vmul.f32 %v532, 1.442695
  %v535 = vpow.pop %v534
  %v536 = vmul.f32 %v533, 1.442695
  %v537 = vpow.pop %v536
  %v538 = vsel %vm268, %v535, 0.0
  %539 = vadd.xlane.f32.xlu0 %v538
  %v540 = vpop.xlane.xlu0 %539
  %v541 = vsel %vm268, %v537, 0.0
  %542 = vadd.xlane.f32.xlu0 %v541
  %v543 = vpop.xlane.xlu0 %542
  %v544 = vrcp.pop %v540
  %v545 = vmul.f32 %v540, %v544
  %v546 = vsub.f32 1.0, %v545
  %v547 = vmul.f32 %v544, %v546
  %v548 = vadd.f32 %v544, %v547
  %vm549 = vweird.f32 %v540
  %vm550 = vweird.f32 %v544
  %vm551 = vmor %vm549, %vm550
  %v552 = vsel %vm551, %v544, %v548
  %v553 = vand.u32 2147483647, %v540
  %vm554 = vcmp.eq.f32.partialorder %v553, 8.507059e+37
  %v555 = vand.u32 %v540, 2147483648
  %v556 = vor.u32 1.1754944e-38, %v555
  %v557 = vsel %vm554, %v556, %v552
  %v558 = vrcp.pop %v543
  %v559 = vmul.f32 %v543, %v558
  %v560 = vsub.f32 1.0, %v559
  %v561 = vmul.f32 %v558, %v560
  %v562 = vadd.f32 %v558, %v561
  %vm563 = vweird.f32 %v543
  %vm564 = vweird.f32 %v558
  %vm565 = vmor %vm563, %vm564
  %v566 = vsel %vm565, %v558, %v562
  %v567 = vand.u32 2147483647, %v543
  %vm568 = vcmp.eq.f32.partialorder %v567, 8.507059e+37
  %v569 = vand.u32 %v543, 2147483648
  %v570 = vor.u32 1.1754944e-38, %v569
  %v571 = vsel %vm568, %v570, %v566
  %v572 = vmul.f32 %v535, %v557
  %v573 = vmul.f32 %v537, %v571
  %v574 = vpack.c.bf16 %v573, %v572
  %v576 = vsel %vm268, %v574, 0
  %578 = vmatpush.bf16.msra.mxu0 0
  %579 = vmatpush.bf16.msra.mxu0 0
  %580 = vmatpush.bf16.msra.mxu0 0
  %581 = vmatpush.bf16.msra.mxu0 0
  %582 = vmatpush.bf16.msra.mxu0 0
  %583 = vmatpush.bf16.msra.mxu0 0
  %584 = vmatpush.bf16.msra.mxu0 0
  %585 = vmatpush.bf16.msra.mxu0 %v237
  %586 = vmatmul.bf16.gmra.mxu0 %v576
  %v587 = vpop.f32.mrf.mxu0
  %v588 = vadd.f32 0.0, %v587
  %v589 = vpop.f32.mrf.mxu0
  %v590 = vadd.f32 0.0, %v589
  %591 = vdwg.mxu0
  %v592 = vadd.f32 %v505, %v588
  %v593 = vadd.f32 %v506, %v590
  %v595 = vperm.slane %v246, 0
  %v597 = vadd.f32 %v592, %v595
  %v598 = vadd.f32 %v593, %v595
  %vm599 = vcmp.gt.f32.partialorder %v597, 0.0
  %vm600 = vcmp.gt.f32.partialorder %v598, 0.0
  %v601 = vmul.f32 %v597, 0.01
  %v602 = vmul.f32 %v598, 0.01
  %v603 = vsel %vm599, %v597, %v601
  %v604 = vsel %vm600, %v598, %v602
  %v605 = vpack.c.bf16 %v603, %v603
  %v606 = vpack.c.bf16 %v604, %v604
  %607 = vst [vmem:[%s6] sm:$0xf] %v605
  %608 = vst [vmem:[%s6 + $0x4] sm:$0xf] %v606
  // Predicated region
  $region26: #{gat_autoencoder_decoder.5} parent=0 // pred_check
    _
  $region27: #{gat_autoencoder_decoder.5} parent=0 // pred_check_branch
    %610 = sbr.rel (0) target = $region29
  $region28: #{gat_autoencoder_decoder.5} parent=0 // pred_region
    _
  $region29: #{gat_autoencoder_decoder.5} parent=0 // pred_fallthru
    _
  // Predicated region
  $region30: #{gat_autoencoder_decoder.5} parent=0 // pred_check
    _
  $region31: #{gat_autoencoder_decoder.5} parent=0 // pred_check_branch
    %612 = sbr.rel (0) target = $region33
  $region32: #{gat_autoencoder_decoder.5} parent=0 // pred_region
    _
  $region33: #{gat_autoencoder_decoder.5} parent=0 // pred_fallthru
    _

// kernel: gat_autoencoder_decoder.9
$region0: #{gat_autoencoder_decoder.9}
  #allocation0 [shape = 'u32[]', space=smem, size = 0x4, offset = 0x4, fixed_abs, tag = 'smem constant byte address 0x4 - core index']
  #allocation1 [shape = 'u32[72,128]{1,0:T(1,128)}', space=vmem, size = 0x9000, scoped, tag = 'internal scratch']
  %s0 = inlined_call_operand.vmem [shape: bf16[16,128], index: 0, kind: input, shape index: {}]
  %s1 = inlined_call_operand.vmem [shape: bf16[128,128], index: 1, kind: input, shape index: {}]
  %s2 = inlined_call_operand.vmem [shape: f32[1,128], index: 2, kind: input, shape index: {}]
  %s3 = inlined_call_operand.vmem [shape: f32[1,128], index: 3, kind: input, shape index: {}]
  %s4 = inlined_call_operand.vmem [shape: f32[1,128], index: 4, kind: input, shape index: {}]
  %s5 = inlined_call_operand.vmem [shape: bf16[128,128], index: 5, kind: input, shape index: {}]
  %s6 = inlined_call_operand.vmem [shape: f32[1,128], index: 6, kind: input, shape index: {}]
  %s7 = inlined_call_operand.vmem [shape: f32[1,128], index: 7, kind: input, shape index: {}]
  %s8 = inlined_call_operand.vmem [shape: f32[1,128], index: 8, kind: input, shape index: {}]
  %s9 = inlined_call_operand.vmem [shape: bf16[128,128], index: 9, kind: input, shape index: {}]
  %s10 = inlined_call_operand.vmem [shape: f32[1,128], index: 10, kind: input, shape index: {}]
  %s11 = inlined_call_operand.vmem [shape: bf16[128,128], index: 11, kind: input, shape index: {}]
  %s12 = inlined_call_operand.vmem [shape: f32[1,128], index: 12, kind: input, shape index: {}]
  %s13 = inlined_call_operand.hbm [shape: f32[16,128], index: 13, kind: output, shape index: {0}]
  %s14 = inlined_call_operand.vmem [shape: f32[16,128], index: 14, kind: output, shape index: {1}]
  %15 = xla_tuple %s13, %s14
  %s16 = sld [smem:[#allocation0]]
  $region70: #{gat_autoencoder_decoder.9} parent=0
    _
  %s18 = ssub.s32 1, %s16
  %s19 = scalar_select 0, %s18, %s16
  $region1: #{gat_autoencoder_decoder.9} parent=0
    #allocation2 [shape = 'u8[8192]{0}', space=vmem, size = 0x2000, scoped, tag = 'output window, operand 0, single buffered']
    #allocation3 [shape = 's32[1]{0}', space=sflag, size = 0x4, scoped, tag = 'scoped memory for gat_autoencoder_decoder.9']
    %20 = vsyncpa [#allocation3], 0
    // Predicated region
    $region2: #{gat_autoencoder_decoder.9} parent=1 // pred_check
      _
    $region3: #{gat_autoencoder_decoder.9} parent=1 // pred_check_branch
      %22 = sbr.rel (0) target = $region5
    $region4: #{gat_autoencoder_decoder.9} parent=1 // pred_region
      _
    $region5: #{gat_autoencoder_decoder.9} parent=1 // pred_fallthru
      _
    // Predicated region
    $region6: #{gat_autoencoder_decoder.9} parent=1 // pred_check
      _
    $region7: #{gat_autoencoder_decoder.9} parent=1 // pred_check_branch
      %24 = sbr.rel (0) target = $region9
    $region8: #{gat_autoencoder_decoder.9} parent=1 // pred_region
      _
    $region9: #{gat_autoencoder_decoder.9} parent=1 // pred_fallthru
      _
    // Predicated region
    $region10: #{gat_autoencoder_decoder.9} parent=1 // pred_check
      _
    $region11: #{gat_autoencoder_decoder.9} parent=1 // pred_check_branch
      %26 = sbr.rel (0) target = $region13
    $region12: #{gat_autoencoder_decoder.9} parent=1 // pred_region
      _
    $region13: #{gat_autoencoder_decoder.9} parent=1 // pred_fallthru
      _
    // Predicated region
    $region14: #{gat_autoencoder_decoder.9} parent=1 // pred_check
      _
    $region15: #{gat_autoencoder_decoder.9} parent=1 // pred_check_branch
      %28 = sbr.rel (0) target = $region17
    $region16: #{gat_autoencoder_decoder.9} parent=1 // pred_region
      _
    $region17: #{gat_autoencoder_decoder.9} parent=1 // pred_fallthru
      _
    // Predicated region
    $region18: #{gat_autoencoder_decoder.9} parent=1 // pred_check
      _
    $region19: #{gat_autoencoder_decoder.9} parent=1 // pred_check_branch
      %30 = sbr.rel (0) target = $region21
    $region20: #{gat_autoencoder_decoder.9} parent=1 // pred_region
      _
    $region21: #{gat_autoencoder_decoder.9} parent=1 // pred_fallthru
      _
    // Predicated region
    $region22: #{gat_autoencoder_decoder.9} parent=1 // pred_check
      _
    $region23: #{gat_autoencoder_decoder.9} parent=1 // pred_check_branch
      %32 = sbr.rel (0) target = $region25
    $region24: #{gat_autoencoder_decoder.9} parent=1 // pred_region
      _
    $region25: #{gat_autoencoder_decoder.9} parent=1 // pred_fallthru
      _
    // Predicated region
    $region26: #{gat_autoencoder_decoder.9} parent=1 // pred_check
      _
    $region27: #{gat_autoencoder_decoder.9} parent=1 // pred_check_branch
      %34 = sbr.rel (0) target = $region29
    $region28: #{gat_autoencoder_decoder.9} parent=1 // pred_region
      _
    $region29: #{gat_autoencoder_decoder.9} parent=1 // pred_fallthru
      _
    // Predicated region
    $region30: #{gat_autoencoder_decoder.9} parent=1 // pred_check
      _
    $region31: #{gat_autoencoder_decoder.9} parent=1 // pred_check_branch
      %36 = sbr.rel (0) target = $region33
    $region32: #{gat_autoencoder_decoder.9} parent=1 // pred_region
      _
    $region33: #{gat_autoencoder_decoder.9} parent=1 // pred_fallthru
      _
    // Predicated region
    $region34: #{gat_autoencoder_decoder.9} parent=1 // pred_check
      _
    $region35: #{gat_autoencoder_decoder.9} parent=1 // pred_check_branch
      %38 = sbr.rel (0) target = $region37
    $region36: #{gat_autoencoder_decoder.9} parent=1 // pred_region
      _
    $region37: #{gat_autoencoder_decoder.9} parent=1 // pred_fallthru
      _
    // Predicated region
    $region38: #{gat_autoencoder_decoder.9} parent=1 // pred_check
      _
    $region39: #{gat_autoencoder_decoder.9} parent=1 // pred_check_branch
      %40 = sbr.rel (0) target = $region41
    $region40: #{gat_autoencoder_decoder.9} parent=1 // pred_region
      _
    $region41: #{gat_autoencoder_decoder.9} parent=1 // pred_fallthru
      _
    // Predicated region
    $region42: #{gat_autoencoder_decoder.9} parent=1 // pred_check
      _
    $region43: #{gat_autoencoder_decoder.9} parent=1 // pred_check_branch
      %42 = sbr.rel (0) target = $region45
    $region44: #{gat_autoencoder_decoder.9} parent=1 // pred_region
      _
    $region45: #{gat_autoencoder_decoder.9} parent=1 // pred_fallthru
      _
    // Predicated region
    $region46: #{gat_autoencoder_decoder.9} parent=1 // pred_check
      _
    $region47: #{gat_autoencoder_decoder.9} parent=1 // pred_check_branch
      %44 = sbr.rel (0) target = $region49
    $region48: #{gat_autoencoder_decoder.9} parent=1 // pred_region
      _
    $region49: #{gat_autoencoder_decoder.9} parent=1 // pred_fallthru
      _
    // Predicated region
    $region50: #{gat_autoencoder_decoder.9} parent=1 // pred_check
      _
    $region51: #{gat_autoencoder_decoder.9} parent=1 // pred_check_branch
      %46 = sbr.rel (0) target = $region53
    $region52: #{gat_autoencoder_decoder.9} parent=1 // pred_region
      _
    $region53: #{gat_autoencoder_decoder.9} parent=1 // pred_fallthru
      _
    %v47 = vld [vmem:[%s0] sm:$0xf]
    %v48 = vld [vmem:[%s0 + $0x4] sm:$0xf]
    %v49 = vld [vmem:[%s1] sm:$0xf]
    %v50 = vld [vmem:[%s1 + $0x4] sm:$0xf]
    %v51 = vld [vmem:[%s1 + $0x8] sm:$0xf]
    %v52 = vld [vmem:[%s1 + $0xc] sm:$0xf]
    %v53 = vld [vmem:[%s1 + $0x10] sm:$0xf]
    %v54 = vld [vmem:[%s1 + $0x14] sm:$0xf]
    %v55 = vld [vmem:[%s1 + $0x18] sm:$0xf]
    %v56 = vld [vmem:[%s1 + $0x1c] sm:$0xf]
    %v57 = vld [vmem:[%s1 + $0x20] sm:$0xf]
    %v58 = vld [vmem:[%s1 + $0x24] sm:$0xf]
    %v59 = vld [vmem:[%s1 + $0x28] sm:$0xf]
    %v60 = vld [vmem:[%s1 + $0x2c] sm:$0xf]
    %v61 = vld [vmem:[%s1 + $0x30] sm:$0xf]
    %v62 = vld [vmem:[%s1 + $0x34] sm:$0xf]
    %v63 = vld [vmem:[%s1 + $0x38] sm:$0xf]
    %v64 = vld [vmem:[%s1 + $0x3c] sm:$0xf]
    %v65 = vld [vmem:[%s2] sm:$0x1]
    %v67 = vperm.slane %v65, 0
    %v71 = vunpack.c.l.b16 %v47
    %v72 = vunpack.c.l.b16 %v48
    %v73 = vpack.c.b16 %v72, %v71
    %v91 = vunpack.c.l.b16 %v49
    %v92 = vunpack.c.l.b16 %v50
    %v93 = vunpack.c.l.b16 %v51
    %v94 = vunpack.c.l.b16 %v52
    %v95 = vunpack.c.l.b16 %v53
    %v96 = vunpack.c.l.b16 %v54
    %v97 = vunpack.c.l.b16 %v55
    %v98 = vunpack.c.l.b16 %v56
    %v99 = vunpack.c.l.b16 %v57
    %v100 = vunpack.c.l.b16 %v58
    %v101 = vunpack.c.l.b16 %v59
    %v102 = vunpack.c.l.b16 %v60
    %v103 = vunpack.c.l.b16 %v61
    %v104 = vunpack.c.l.b16 %v62
    %v105 = vunpack.c.l.b16 %v63
    %v106 = vunpack.c.l.b16 %v64
    %v107 = vpack.c.b16 %v92, %v91
    %v108 = vpack.c.b16 %v94, %v93
    %v109 = vpack.c.b16 %v96, %v95
    %v110 = vpack.c.b16 %v98, %v97
    %v111 = vpack.c.b16 %v100, %v99
    %v112 = vpack.c.b16 %v102, %v101
    %v113 = vpack.c.b16 %v104, %v103
    %v114 = vpack.c.b16 %v106, %v105
    %123 = vmatpush.bf16.msra.mxu0 %v114
    %124 = vmatpush.bf16.msra.mxu0 %v113
    %125 = vmatpush.bf16.msra.mxu0 %v112
    %126 = vmatpush.bf16.msra.mxu0 %v111
    %127 = vmatpush.bf16.msra.mxu0 %v110
    %128 = vmatpush.bf16.msra.mxu0 %v109
    %129 = vmatpush.bf16.msra.mxu0 %v108
    %130 = vmatpush.bf16.msra.mxu0 %v107
    %131 = vmatmul.bf16.gmra.mxu0 %v73
    %v132 = vpop.f32.mrf.mxu0
    %v133 = vadd.f32 %v67, %v132
    %v134 = vpop.f32.mrf.mxu0
    %v135 = vadd.f32 %v67, %v134
    %136 = vdwg.mxu0
    %137 = vst [vmem:[%s14] sm:$0xff] %v133
    %138 = vst [vmem:[%s14 + $0x8] sm:$0xff] %v135
    %v139 = vld [vmem:[%s3] sm:$0x1]
    %v140 = vmul.f32 %v139, 0.999995
    %v142 = vperm.slane %v140, 0
    %v144 = vmul.f32 %v133, %v142
    %v145 = vmul.f32 %v135, %v142
    %v146 = vld [vmem:[%s4] sm:$0x1]
    %v148 = vperm.slane %v146, 0
    %v150 = vadd.f32 %v144, %v148
    %v151 = vadd.f32 %v145, %v148
    %v152 = vmax.f32 %v150, 0.0
    %v153 = vmax.f32 %v151, 0.0
    %v154 = vpack.c.bf16 %v153, %v152
    %v155 = vld [vmem:[%s5] sm:$0xf]
    %v156 = vld [vmem:[%s5 + $0x4] sm:$0xf]
    %v157 = vld [vmem:[%s5 + $0x8] sm:$0xf]
    %v158 = vld [vmem:[%s5 + $0xc] sm:$0xf]
    %v159 = vld [vmem:[%s5 + $0x10] sm:$0xf]
    %v160 = vld [vmem:[%s5 + $0x14] sm:$0xf]
    %v161 = vld [vmem:[%s5 + $0x18] sm:$0xf]
    %v162 = vld [vmem:[%s5 + $0x1c] sm:$0xf]
    %v163 = vld [vmem:[%s5 + $0x20] sm:$0xf]
    %v164 = vld [vmem:[%s5 + $0x24] sm:$0xf]
    %v165 = vld [vmem:[%s5 + $0x28] sm:$0xf]
    %v166 = vld [vmem:[%s5 + $0x2c] sm:$0xf]
    %v167 = vld [vmem:[%s5 + $0x30] sm:$0xf]
    %v168 = vld [vmem:[%s5 + $0x34] sm:$0xf]
    %v169 = vld [vmem:[%s5 + $0x38] sm:$0xf]
    %v170 = vld [vmem:[%s5 + $0x3c] sm:$0xf]
    %v171 = vld [vmem:[%s6] sm:$0x1]
    %v173 = vperm.slane %v171, 0
    %v191 = vunpack.c.l.b16 %v155
    %v192 = vunpack.c.l.b16 %v156
    %v193 = vunpack.c.l.b16 %v157
    %v194 = vunpack.c.l.b16 %v158
    %v195 = vunpack.c.l.b16 %v159
    %v196 = vunpack.c.l.b16 %v160
    %v197 = vunpack.c.l.b16 %v161
    %v198 = vunpack.c.l.b16 %v162
    %v199 = vunpack.c.l.b16 %v163
    %v200 = vunpack.c.l.b16 %v164
    %v201 = vunpack.c.l.b16 %v165
    %v202 = vunpack.c.l.b16 %v166
    %v203 = vunpack.c.l.b16 %v167
    %v204 = vunpack.c.l.b16 %v168
    %v205 = vunpack.c.l.b16 %v169
    %v206 = vunpack.c.l.b16 %v170
    %v207 = vpack.c.b16 %v192, %v191
    %v208 = vpack.c.b16 %v194, %v193
    %v209 = vpack.c.b16 %v196, %v195
    %v210 = vpack.c.b16 %v198, %v197
    %v211 = vpack.c.b16 %v200, %v199
    %v212 = vpack.c.b16 %v202, %v201
    %v213 = vpack.c.b16 %v204, %v203
    %v214 = vpack.c.b16 %v206, %v205
    %223 = vmatpush.bf16.msra.mxu0 %v214
    %224 = vmatpush.bf16.msra.mxu0 %v213
    %225 = vmatpush.bf16.msra.mxu0 %v212
    %226 = vmatpush.bf16.msra.mxu0 %v211
    %227 = vmatpush.bf16.msra.mxu0 %v210
    %228 = vmatpush.bf16.msra.mxu0 %v209
    %229 = vmatpush.bf16.msra.mxu0 %v208
    %230 = vmatpush.bf16.msra.mxu0 %v207
    %231 = vmatmul.bf16.gmra.mxu0 %v154
    %v232 = vpop.f32.mrf.mxu0
    %v233 = vadd.f32 %v173, %v232
    %v234 = vpop.f32.mrf.mxu0
    %v235 = vadd.f32 %v173, %v234
    %236 = vdwg.mxu0
    %v237 = vmax.f32 %v233, 0.0
    %v238 = vmax.f32 %v235, 0.0
    %v239 = vld [vmem:[%s7] sm:$0x1]
    %v240 = vmul.f32 %v239, 0.999995
    %v242 = vperm.slane %v240, 0
    %v244 = vmul.f32 %v237, %v242
    %v245 = vmul.f32 %v238, %v242
    %v246 = vld [vmem:[%s8] sm:$0x1]
    %v248 = vperm.slane %v246, 0
    %v250 = vadd.f32 %v244, %v248
    %v251 = vadd.f32 %v245, %v248
    %v252 = vpack.c.bf16 %v251, %v250
    %v253 = vld [vmem:[%s9] sm:$0xf]
    %v254 = vld [vmem:[%s9 + $0x4] sm:$0xf]
    %v255 = vld [vmem:[%s9 + $0x8] sm:$0xf]
    %v256 = vld [vmem:[%s9 + $0xc] sm:$0xf]
    %v257 = vld [vmem:[%s9 + $0x10] sm:$0xf]
    %v258 = vld [vmem:[%s9 + $0x14] sm:$0xf]
    %v259 = vld [vmem:[%s9 + $0x18] sm:$0xf]
    %v260 = vld [vmem:[%s9 + $0x1c] sm:$0xf]
    %v261 = vld [vmem:[%s9 + $0x20] sm:$0xf]
    %v262 = vld [vmem:[%s9 + $0x24] sm:$0xf]
    %v263 = vld [vmem:[%s9 + $0x28] sm:$0xf]
    %v264 = vld [vmem:[%s9 + $0x2c] sm:$0xf]
    %v265 = vld [vmem:[%s9 + $0x30] sm:$0xf]
    %v266 = vld [vmem:[%s9 + $0x34] sm:$0xf]
    %v267 = vld [vmem:[%s9 + $0x38] sm:$0xf]
    %v268 = vld [vmem:[%s9 + $0x3c] sm:$0xf]
    %v269 = vld [vmem:[%s10] sm:$0x1]
    %v271 = vperm.slane %v269, 0
    %v289 = vunpack.c.l.b16 %v253
    %v290 = vunpack.c.l.b16 %v254
    %v291 = vunpack.c.l.b16 %v255
    %v292 = vunpack.c.l.b16 %v256
    %v293 = vunpack.c.l.b16 %v257
    %v294 = vunpack.c.l.b16 %v258
    %v295 = vunpack.c.l.b16 %v259
    %v296 = vunpack.c.l.b16 %v260
    %v297 = vunpack.c.l.b16 %v261
    %v298 = vunpack.c.l.b16 %v262
    %v299 = vunpack.c.l.b16 %v263
    %v300 = vunpack.c.l.b16 %v264
    %v301 = vunpack.c.l.b16 %v265
    %v302 = vunpack.c.l.b16 %v266
    %v303 = vunpack.c.l.b16 %v267
    %v304 = vunpack.c.l.b16 %v268
    %v305 = vpack.c.b16 %v290, %v289
    %v306 = vpack.c.b16 %v292, %v291
    %v307 = vpack.c.b16 %v294, %v293
    %v308 = vpack.c.b16 %v296, %v295
    %v309 = vpack.c.b16 %v298, %v297
    %v310 = vpack.c.b16 %v300, %v299
    %v311 = vpack.c.b16 %v302, %v301
    %v312 = vpack.c.b16 %v304, %v303
    %321 = vmatpush.bf16.msra.mxu0 %v312
    %322 = vmatpush.bf16.msra.mxu0 %v311
    %323 = vmatpush.bf16.msra.mxu0 %v310
    %324 = vmatpush.bf16.msra.mxu0 %v309
    %325 = vmatpush.bf16.msra.mxu0 %v308
    %326 = vmatpush.bf16.msra.mxu0 %v307
    %327 = vmatpush.bf16.msra.mxu0 %v306
    %328 = vmatpush.bf16.msra.mxu0 %v305
    %329 = vmatmul.bf16.gmra.mxu0 %v252
    %v330 = vpop.f32.mrf.mxu0
    %v331 = vadd.f32 %v271, %v330
    %v332 = vpop.f32.mrf.mxu0
    %v333 = vadd.f32 %v271, %v332
    %334 = vdwg.mxu0
    %v335 = vmax.f32 %v331, 0.0
    %v336 = vmax.f32 %v333, 0.0
    %v337 = vpack.c.bf16 %v336, %v335
    %v338 = vld [vmem:[%s11] sm:$0xf]
    %v339 = vld [vmem:[%s11 + $0x4] sm:$0xf]
    %v340 = vld [vmem:[%s11 + $0x8] sm:$0xf]
    %v341 = vld [vmem:[%s11 + $0xc] sm:$0xf]
    %v342 = vld [vmem:[%s11 + $0x10] sm:$0xf]
    %v343 = vld [vmem:[%s11 + $0x14] sm:$0xf]
    %v344 = vld [vmem:[%s11 + $0x18] sm:$0xf]
    %v345 = vld [vmem:[%s11 + $0x1c] sm:$0xf]
    %v346 = vld [vmem:[%s11 + $0x20] sm:$0xf]
    %v347 = vld [vmem:[%s11 + $0x24] sm:$0xf]
    %v348 = vld [vmem:[%s11 + $0x28] sm:$0xf]
    %v349 = vld [vmem:[%s11 + $0x2c] sm:$0xf]
    %v350 = vld [vmem:[%s11 + $0x30] sm:$0xf]
    %v351 = vld [vmem:[%s11 + $0x34] sm:$0xf]
    %v352 = vld [vmem:[%s11 + $0x38] sm:$0xf]
    %v353 = vld [vmem:[%s11 + $0x3c] sm:$0xf]
    %v354 = vld [vmem:[%s12] sm:$0x1]
    %v356 = vperm.slane %v354, 0
    %v374 = vunpack.c.l.b16 %v338
    %v375 = vunpack.c.l.b16 %v339
    %v376 = vunpack.c.l.b16 %v340
    %v377 = vunpack.c.l.b16 %v341
    %v378 = vunpack.c.l.b16 %v342
    %v379 = vunpack.c.l.b16 %v343
    %v380 = vunpack.c.l.b16 %v344
    %v381 = vunpack.c.l.b16 %v345
    %v382 = vunpack.c.l.b16 %v346
    %v383 = vunpack.c.l.b16 %v347
    %v384 = vunpack.c.l.b16 %v348
    %v385 = vunpack.c.l.b16 %v349
    %v386 = vunpack.c.l.b16 %v350
    %v387 = vunpack.c.l.b16 %v351
    %v388 = vunpack.c.l.b16 %v352
    %v389 = vunpack.c.l.b16 %v353
    %v390 = vpack.c.b16 %v375, %v374
    %v391 = vpack.c.b16 %v377, %v376
    %v392 = vpack.c.b16 %v379, %v378
    %v393 = vpack.c.b16 %v381, %v380
    %v394 = vpack.c.b16 %v383, %v382
    %v395 = vpack.c.b16 %v385, %v384
    %v396 = vpack.c.b16 %v387, %v386
    %v397 = vpack.c.b16 %v389, %v388
    %406 = vmatpush.bf16.msra.mxu0 %v397
    %407 = vmatpush.bf16.msra.mxu0 %v396
    %408 = vmatpush.bf16.msra.mxu0 %v395
    %409 = vmatpush.bf16.msra.mxu0 %v394
    %410 = vmatpush.bf16.msra.mxu0 %v393
    %411 = vmatpush.bf16.msra.mxu0 %v392
    %412 = vmatpush.bf16.msra.mxu0 %v391
    %413 = vmatpush.bf16.msra.mxu0 %v390
    %414 = vmatmul.bf16.gmra.mxu0 %v337
    %v415 = vpop.f32.mrf.mxu0
    %v416 = vadd.f32 %v356, %v415
    %v417 = vpop.f32.mrf.mxu0
    %v418 = vadd.f32 %v356, %v417
    %419 = vdwg.mxu0
    %420 = vst [vmem:[#allocation2] sm:$0xff] %v416
    %421 = vst [vmem:[#allocation2 + $0x8] sm:$0xff] %v418
    // Predicated region
    $region54: #{gat_autoencoder_decoder.9} parent=1 // pred_check
      _
    $region55: #{gat_autoencoder_decoder.9} parent=1 // pred_check_branch
      %423 = sbr.rel (0) target = $region57
    $region56: #{gat_autoencoder_decoder.9} parent=1 // pred_region
      %425 = vsyncadd [#allocation3], 0
      %s426 = sshll.u32 [#allocation2], 4
      %s427 = int_to_ptr.vmem [resolvable:$true] %s426
      %s428 = sshll.u32 %s13, 4
      %s429 = int_to_ptr.hbm [resolvable:$true] %s428
      %434 = dma.vmem_to_hbm [thread:$0]  %s427, 256, %s429, [#allocation3], 128, 128, 8
    $region57: #{gat_autoencoder_decoder.9} parent=1 // pred_fallthru
      _
    // Predicated region
    $region58: #{gat_autoencoder_decoder.9} parent=1 // pred_check
      _
    $region59: #{gat_autoencoder_decoder.9} parent=1 // pred_check_branch
      %436 = sbr.rel (0) target = $region61
    $region60: #{gat_autoencoder_decoder.9} parent=1 // pred_region
      _
    $region61: #{gat_autoencoder_decoder.9} parent=1 // pred_fallthru
      _
    // Predicated region
    $region62: #{gat_autoencoder_decoder.9} parent=1 // pred_check
      _
    $region63: #{gat_autoencoder_decoder.9} parent=1 // pred_check_branch
      %438 = sbr.rel (0) target = $region65
    $region64: #{gat_autoencoder_decoder.9} parent=1 // pred_region
      %440 = dma.done [#allocation3], 256
    $region65: #{gat_autoencoder_decoder.9} parent=1 // pred_fallthru
      _
    // Predicated region
    $region66: #{gat_autoencoder_decoder.9} parent=1 // pred_check
      _
    $region67: #{gat_autoencoder_decoder.9} parent=1 // pred_check_branch
      %442 = sbr.rel (0) target = $region69
    $region68: #{gat_autoencoder_decoder.9} parent=1 // pred_region
      _
    $region69: #{gat_autoencoder_decoder.9} parent=1 // pred_fallthru
      _
    %443 = vsyncpa [#allocation3], 1

</llo_original>
